<compile_context>
chip_gen: v7x
topology: tpu7x:2x2x1
jax: 0.10.0
libtpu: 0.0.40
codegen_flags: <defaults>
</compile_context>

<pallas_src>
import functools
import math

import jax
import jax.numpy as jnp
from jax.experimental import pallas as pl
from jax.experimental.pallas import tpu as pltpu

# ----------------------------- model configuration (small, synthetic) ---------------
B = 2          # batch
S = 8          # sequence length
H = 32         # hidden size
NUM_HEADS = 2
HEAD_DIM = H // NUM_HEADS
INTER = 64     # FFN intermediate size
VOCAB = 100
MAX_POS = 16
TYPE_VOCAB = 2
NUM_LAYERS = 2
LN_EPS = 1e-12


def _layernorm(x, gamma, beta):
    """LayerNorm over the last axis (BERT-style, eps=1e-12), f32 math."""
    mu = jnp.mean(x, axis=-1, keepdims=True)
    var = jnp.mean((x - mu) ** 2, axis=-1, keepdims=True)
    return (x - mu) * jax.lax.rsqrt(var + LN_EPS) * gamma + beta


def _split_heads(x):
    """(S, H) -> (NUM_HEADS, S, HEAD_DIM) via lane slices stacked on the major axis."""
    return jnp.concatenate(
        [x[None, :, h * HEAD_DIM:(h + 1) * HEAD_DIM] for h in range(NUM_HEADS)],
        axis=0)


# ----------------------------- fully fused BERT encoder kernel ----------------------
def bert_encoder_kernel(we_ref, pe_ref, te_ref, mask_ref, eg_ref, eb_ref,
                        wqkv_ref, bqkv_ref, wo_ref, bo_ref, l1g_ref, l1b_ref,
                        w1_ref, b1_ref, w2_ref, b2_ref, l2g_ref, l2b_ref,
                        out_ref):
    f32 = jnp.float32
    bf16 = jnp.bfloat16

    # ---- embeddings: word + position + token-type, then LayerNorm (f32) ----
    x = we_ref[0] + pe_ref[...] + te_ref[0]                 # (S, H)
    h = _layernorm(x, eg_ref[...], eb_ref[...])             # (S, H) f32

    # ---- additive attention-mask bias, computed once per sequence ----
    bias = ((1.0 - mask_ref[0]) * -10000.0)[None, :, :]     # (1, 1, S)

    scale = 1.0 / math.sqrt(HEAD_DIM)

    # Static (unrolled) loop over layers; h stays resident in vregs/VMEM throughout.
    for li in range(NUM_LAYERS):
        # --- fused QKV projection: one (S,H)@(H,3H) MXU op, bf16 operands, f32 acc ---
        qkv = jnp.dot(h.astype(bf16), wqkv_ref[li],
                      preferred_element_type=f32) + bqkv_ref[li]      # (S, 3H) f32
        q = qkv[:, 0:H] * scale        # fold 1/sqrt(dh) into Q once
        k = qkv[:, H:2 * H]
        v = qkv[:, 2 * H:3 * H]

        # --- all heads in one batched dot_general over (NUM_HEADS, S, HEAD_DIM) ---
        qh = _split_heads(q).astype(bf16)
        kh = _split_heads(k).astype(bf16)
        vh = _split_heads(v).astype(bf16)

        s = jnp.einsum('nqd,nkd->nqk', qh, kh,
                       preferred_element_type=f32)                    # (NH, S, S) f32
        s = s + bias
        m = jnp.max(s, axis=-1, keepdims=True)
        e = jnp.exp(s - m)
        p = e * pl.reciprocal(jnp.sum(e, axis=-1, keepdims=True), approx=True)
        ctx = jnp.einsum('nqk,nkd->nqd', p.astype(bf16), vh,
                         preferred_element_type=f32)                  # (NH, S, DH) f32

        # merge heads back into the lane dim: (S, H), then one output projection
        ctx_m = jnp.concatenate([ctx[hd] for hd in range(NUM_HEADS)], axis=-1)
        attn = jnp.dot(ctx_m.astype(bf16), wo_ref[li],
                       preferred_element_type=f32) + bo_ref[li]       # (S, H)

        # --- Add & Norm 1 (f32) ---
        h = _layernorm(h + attn, l1g_ref[li], l1b_ref[li])

        # --- Feed-forward (GELU), 2-D matmuls ---
        ff = jnp.dot(h.astype(bf16), w1_ref[li],
                     preferred_element_type=f32) + b1_ref[li]         # (S, INTER)
        # TODO(synk): HF BERT uses exact erf-GELU; tanh-approx GELU used for robust lowering.
        ff = jax.nn.gelu(ff, approximate=True)
        ff = jnp.dot(ff.astype(bf16), w2_ref[li],
                     preferred_element_type=f32) + b2_ref[li]         # (S, H)

        # --- Add & Norm 2 (f32) ---
        h = _layernorm(h + ff, l2g_ref[li], l2b_ref[li])

    out_ref[0] = h.astype(out_ref.dtype)


def bert_encoder(we, pe, te, mask, params):
    """One pallas_call for the whole encoder; grid=(B,) parallel over sequences."""
    L = NUM_LAYERS
    const3 = lambda b: (0, 0, 0)
    in_specs = [
        pl.BlockSpec((1, S, H), lambda b: (b, 0, 0)),     # word emb (gathered)
        pl.BlockSpec((S, H), lambda b: (0, 0)),           # position emb
        pl.BlockSpec((1, S, H), lambda b: (b, 0, 0)),     # token-type emb (gathered)
        pl.BlockSpec((1, 1, S), lambda b: (b, 0, 0)),     # attention mask
        pl.BlockSpec((1, H), lambda b: (0, 0)),           # emb LN gamma
        pl.BlockSpec((1, H), lambda b: (0, 0)),           # emb LN beta
        pl.BlockSpec((L, H, 3 * H), const3),              # fused QKV weight (bf16)
        pl.BlockSpec((L, 1, 3 * H), const3),              # fused QKV bias
        pl.BlockSpec((L, H, H), const3),                  # Wo (bf16)
        pl.BlockSpec((L, 1, H), const3),                  # bo
        pl.BlockSpec((L, 1, H), const3),                  # LN1 gamma
        pl.BlockSpec((L, 1, H), const3),                  # LN1 beta
        pl.BlockSpec((L, H, INTER), const3),              # W1 (bf16)
        pl.BlockSpec((L, 1, INTER), const3),              # b1
        pl.BlockSpec((L, INTER, H), const3),              # W2 (bf16)
        pl.BlockSpec((L, 1, H), const3),                  # b2
        pl.BlockSpec((L, 1, H), const3),                  # LN2 gamma
        pl.BlockSpec((L, 1, H), const3),                  # LN2 beta
    ]
    out_specs = pl.BlockSpec((1, S, H), lambda b: (b, 0, 0))
    return pl.pallas_call(
        bert_encoder_kernel,
        out_shape=jax.ShapeDtypeStruct((B, S, H), jnp.float32),
        grid=(B,),
        in_specs=in_specs,
        out_specs=out_specs,
        compiler_params=pltpu.CompilerParams(dimension_semantics=("parallel",)),
    )(we, pe, te, mask,
      params['emb_ln_g'], params['emb_ln_b'],
      params['wqkv'], params['bqkv'], params['wo'], params['bo'],
      params['ln1_g'], params['ln1_b'],
      params['w1'], params['b1'], params['w2'], params['b2'],
      params['ln2_g'], params['ln2_b'])


# ----------------------------- parameter init (deterministic) -----------------------
def init_params(key):
    std = 0.02

    def nrm(k, shape):
        return jax.random.normal(k, shape, jnp.float32) * std

    keys = jax.random.split(key, 3 + NUM_LAYERS)
    wqkv, wo, w1, w2 = [], [], [], []
    for li in range(NUM_LAYERS):
        lk = jax.random.split(keys[3 + li], 6)
        wq, wk, wv = nrm(lk[0], (H, H)), nrm(lk[1], (H, H)), nrm(lk[2], (H, H))
        wqkv.append(jnp.concatenate([wq, wk, wv], axis=1))     # (H, 3H)
        wo.append(nrm(lk[3], (H, H)))
        w1.append(nrm(lk[4], (H, INTER)))
        w2.append(nrm(lk[5], (INTER, H)))

    f32 = jnp.float32
    bf16 = jnp.bfloat16
    return {
        'word_emb': nrm(keys[0], (VOCAB, H)),
        'pos_emb': nrm(keys[1], (MAX_POS, H)),
        'type_emb': nrm(keys[2], (TYPE_VOCAB, H)),
        'emb_ln_g': jnp.ones((1, H), f32),
        'emb_ln_b': jnp.zeros((1, H), f32),
        'wqkv': jnp.stack(wqkv).astype(bf16),                  # (L, H, 3H)
        'bqkv': jnp.zeros((NUM_LAYERS, 1, 3 * H), f32),
        'wo': jnp.stack(wo).astype(bf16),                      # (L, H, H)
        'bo': jnp.zeros((NUM_LAYERS, 1, H), f32),
        'ln1_g': jnp.ones((NUM_LAYERS, 1, H), f32),
        'ln1_b': jnp.zeros((NUM_LAYERS, 1, H), f32),
        'w1': jnp.stack(w1).astype(bf16),                      # (L, H, INTER)
        'b1': jnp.zeros((NUM_LAYERS, 1, INTER), f32),
        'w2': jnp.stack(w2).astype(bf16),                      # (L, INTER, H)
        'b2': jnp.zeros((NUM_LAYERS, 1, H), f32),
        'ln2_g': jnp.ones((NUM_LAYERS, 1, H), f32),
        'ln2_b': jnp.zeros((NUM_LAYERS, 1, H), f32),
    }


# ----------------------------- LanguageEmbeddingLayer.forward -----------------------
@jax.jit
def language_embedding_layer(bert_sent, bert_sent_type, bert_sent_mask, params):
    """Mirrors LanguageEmbeddingLayer.forward: returns BERT last hidden state (B,S,H)."""
    # Embedding-table gathers stay in plain JAX (glue); everything else is one Pallas call.
    # TODO(synk): in-kernel gather via scalar-prefetch ids would need a multi-tile dynamic
    # gather; left as XLA gather since the gathered tensors are only a few KB here.
    we = jnp.take(params['word_emb'], bert_sent, axis=0)           # (B, S, H)
    te = jnp.take(params['type_emb'], bert_sent_type, axis=0)      # (B, S, H)
    pe = params['pos_emb'][:S, :]                                  # (S, H)
    mask = bert_sent_mask.astype(jnp.float32)[:, None, :]          # (B, 1, S)
    return bert_encoder(we, pe, te, mask, params)                  # (B, S, H)


if __name__ == "__main__":
    key = jax.random.PRNGKey(0)
    k_par, k_ids, k_typ = jax.random.split(key, 3)

    params = init_params(k_par)

    bert_sent = jax.random.randint(k_ids, (B, S), 0, VOCAB, dtype=jnp.int32)
    bert_sent_type = jax.random.randint(k_typ, (B, S), 0, TYPE_VOCAB, dtype=jnp.int32)
    # simple padding mask: sequence lengths [8, 5]
    lengths = jnp.array([[S], [5]], dtype=jnp.int32)
    bert_sent_mask = (jnp.arange(S)[None, :] < lengths).astype(jnp.float32)

    out = language_embedding_layer(bert_sent, bert_sent_type, bert_sent_mask, params)
    out = jax.block_until_ready(out)

    assert out.shape == (B, S, H), out.shape
    assert bool(jnp.all(jnp.isfinite(out)))
    print("KERNEL_OK")
</pallas_src>

<mosaic_0001>
module attributes {stable_mosaic.version = 11 : i64} {
  func.func @bert_encoder_kernel(%arg0: i32, %arg1: memref<1x8x32xf32, #tpu.memory_space<vmem>>, %arg2: memref<8x32xf32, #tpu.memory_space<vmem>>, %arg3: memref<1x8x32xf32, #tpu.memory_space<vmem>>, %arg4: memref<1x1x8xf32, #tpu.memory_space<vmem>>, %arg5: memref<1x32xf32, #tpu.memory_space<vmem>>, %arg6: memref<1x32xf32, #tpu.memory_space<vmem>>, %arg7: memref<2x32x96xbf16, #tpu.memory_space<vmem>>, %arg8: memref<2x1x96xf32, #tpu.memory_space<vmem>>, %arg9: memref<2x32x32xbf16, #tpu.memory_space<vmem>>, %arg10: memref<2x1x32xf32, #tpu.memory_space<vmem>>, %arg11: memref<2x1x32xf32, #tpu.memory_space<vmem>>, %arg12: memref<2x1x32xf32, #tpu.memory_space<vmem>>, %arg13: memref<2x32x64xbf16, #tpu.memory_space<vmem>>, %arg14: memref<2x1x64xf32, #tpu.memory_space<vmem>>, %arg15: memref<2x64x32xbf16, #tpu.memory_space<vmem>>, %arg16: memref<2x1x32xf32, #tpu.memory_space<vmem>>, %arg17: memref<2x1x32xf32, #tpu.memory_space<vmem>>, %arg18: memref<2x1x32xf32, #tpu.memory_space<vmem>>, %arg19: memref<1x8x32xf32, #tpu.memory_space<vmem>>) attributes {dimension_semantics = [#tpu.dimension_semantics<parallel>], iteration_bounds = array<i64: 2>, scalar_prefetch = 0 : i64, scratch_operands = 0 : i64, tpu.core_type = #tpu.core_type<tc>, window_params = [{transform_indices = @transform_0, window_bounds = array<i64: 1, 8, 32>}, {pipeline_mode = #tpu.pipeline_mode<synchronous>, transform_indices = @transform_1, window_bounds = array<i64: 8, 32>}, {transform_indices = @transform_2, window_bounds = array<i64: 1, 8, 32>}, {transform_indices = @transform_3, window_bounds = array<i64: 1, 1, 8>}, {pipeline_mode = #tpu.pipeline_mode<synchronous>, transform_indices = @transform_4, window_bounds = array<i64: 1, 32>}, {pipeline_mode = #tpu.pipeline_mode<synchronous>, transform_indices = @transform_5, window_bounds = array<i64: 1, 32>}, {pipeline_mode = #tpu.pipeline_mode<synchronous>, transform_indices = @transform_6, window_bounds = array<i64: 2, 32, 96>}, {pipeline_mode = #tpu.pipeline_mode<synchronous>, transform_indices = @transform_7, window_bounds = array<i64: 2, 1, 96>}, {pipeline_mode = #tpu.pipeline_mode<synchronous>, transform_indices = @transform_8, window_bounds = array<i64: 2, 32, 32>}, {pipeline_mode = #tpu.pipeline_mode<synchronous>, transform_indices = @transform_9, window_bounds = array<i64: 2, 1, 32>}, {pipeline_mode = #tpu.pipeline_mode<synchronous>, transform_indices = @transform_10, window_bounds = array<i64: 2, 1, 32>}, {pipeline_mode = #tpu.pipeline_mode<synchronous>, transform_indices = @transform_11, window_bounds = array<i64: 2, 1, 32>}, {pipeline_mode = #tpu.pipeline_mode<synchronous>, transform_indices = @transform_12, window_bounds = array<i64: 2, 32, 64>}, {pipeline_mode = #tpu.pipeline_mode<synchronous>, transform_indices = @transform_13, window_bounds = array<i64: 2, 1, 64>}, {pipeline_mode = #tpu.pipeline_mode<synchronous>, transform_indices = @transform_14, window_bounds = array<i64: 2, 64, 32>}, {pipeline_mode = #tpu.pipeline_mode<synchronous>, transform_indices = @transform_15, window_bounds = array<i64: 2, 1, 32>}, {pipeline_mode = #tpu.pipeline_mode<synchronous>, transform_indices = @transform_16, window_bounds = array<i64: 2, 1, 32>}, {pipeline_mode = #tpu.pipeline_mode<synchronous>, transform_indices = @transform_17, window_bounds = array<i64: 2, 1, 32>}, {transform_indices = @transform_18, window_bounds = array<i64: 1, 8, 32>}]} {
    %c0 = arith.constant 0 : index
    %c0_0 = arith.constant 0 : index
    %c0_1 = arith.constant 0 : index
    %0 = vector.load %arg1[%c0, %c0_0, %c0_1] : memref<1x8x32xf32, #tpu.memory_space<vmem>>, vector<1x8x32xf32>
    %1 = vector.shape_cast %0 : vector<1x8x32xf32> to vector<8x32xf32>
    %c0_2 = arith.constant 0 : index
    %c0_3 = arith.constant 0 : index
    %2 = vector.load %arg2[%c0_2, %c0_3] : memref<8x32xf32, #tpu.memory_space<vmem>>, vector<8x32xf32>
    %3 = arith.addf %1, %2 : vector<8x32xf32>
    %c0_4 = arith.constant 0 : index
    %c0_5 = arith.constant 0 : index
    %c0_6 = arith.constant 0 : index
    %4 = vector.load %arg3[%c0_4, %c0_5, %c0_6] : memref<1x8x32xf32, #tpu.memory_space<vmem>>, vector<1x8x32xf32>
    %5 = vector.shape_cast %4 : vector<1x8x32xf32> to vector<8x32xf32>
    %6 = arith.addf %3, %5 : vector<8x32xf32>
    %c0_7 = arith.constant 0 : index
    %c0_8 = arith.constant 0 : index
    %7 = vector.load %arg5[%c0_7, %c0_8] : memref<1x32xf32, #tpu.memory_space<vmem>>, vector<1x32xf32>
    %c0_9 = arith.constant 0 : index
    %c0_10 = arith.constant 0 : index
    %8 = vector.load %arg6[%c0_9, %c0_10] : memref<1x32xf32, #tpu.memory_space<vmem>>, vector<1x32xf32>
    %cst = arith.constant dense<0.000000e+00> : vector<8xf32>
    %9 = vector.multi_reduction <add>, %6, %cst [1] : vector<8x32xf32> to vector<8xf32>
    %10 = vector.shape_cast %9 : vector<8xf32> to vector<8x1xf32>
    %cst_11 = arith.constant 3.200000e+01 : f32
    %11 = vector.broadcast %cst_11 : f32 to vector<8x1xf32>
    %12 = arith.divf %10, %11 : vector<8x1xf32>
    %13 = vector.broadcast %12 : vector<8x1xf32> to vector<8x32xf32>
    %14 = arith.subf %6, %13 : vector<8x32xf32>
    %15 = arith.mulf %14, %14 : vector<8x32xf32>
    %cst_12 = arith.constant dense<0.000000e+00> : vector<8xf32>
    %16 = vector.multi_reduction <add>, %15, %cst_12 [1] : vector<8x32xf32> to vector<8xf32>
    %17 = vector.shape_cast %16 : vector<8xf32> to vector<8x1xf32>
    %cst_13 = arith.constant 3.200000e+01 : f32
    %18 = vector.broadcast %cst_13 : f32 to vector<8x1xf32>
    %19 = arith.divf %17, %18 : vector<8x1xf32>
    %20 = vector.broadcast %12 : vector<8x1xf32> to vector<8x32xf32>
    %21 = arith.subf %6, %20 : vector<8x32xf32>
    %cst_14 = arith.constant 9.99999996E-13 : f32
    %22 = vector.broadcast %cst_14 : f32 to vector<8x1xf32>
    %23 = arith.addf %19, %22 : vector<8x1xf32>
    %24 = math.rsqrt %23 : vector<8x1xf32>
    %25 = vector.broadcast %24 : vector<8x1xf32> to vector<8x32xf32>
    %26 = arith.mulf %21, %25 : vector<8x32xf32>
    %27 = vector.broadcast %7 : vector<1x32xf32> to vector<8x32xf32>
    %28 = arith.mulf %26, %27 : vector<8x32xf32>
    %29 = vector.broadcast %8 : vector<1x32xf32> to vector<8x32xf32>
    %30 = arith.addf %28, %29 : vector<8x32xf32>
    %c0_15 = arith.constant 0 : index
    %c0_16 = arith.constant 0 : index
    %c0_17 = arith.constant 0 : index
    %31 = vector.load %arg4[%c0_15, %c0_16, %c0_17] : memref<1x1x8xf32, #tpu.memory_space<vmem>>, vector<1x1x8xf32>
    %32 = vector.shape_cast %31 : vector<1x1x8xf32> to vector<1x8xf32>
    %cst_18 = arith.constant 1.000000e+00 : f32
    %33 = vector.broadcast %cst_18 : f32 to vector<1x8xf32>
    %34 = arith.subf %33, %32 : vector<1x8xf32>
    %cst_19 = arith.constant -1.000000e+04 : f32
    %35 = vector.broadcast %cst_19 : f32 to vector<1x8xf32>
    %36 = arith.mulf %34, %35 : vector<1x8xf32>
    %37 = vector.shape_cast %36 : vector<1x8xf32> to vector<1x1x8xf32>
    %38 = arith.truncf %30 : vector<8x32xf32> to vector<8x32xbf16>
    %c0_20 = arith.constant 0 : index
    %c0_21 = arith.constant 0 : index
    %c0_22 = arith.constant 0 : index
    %39 = vector.load %arg7[%c0_20, %c0_21, %c0_22] : memref<2x32x96xbf16, #tpu.memory_space<vmem>>, vector<1x32x96xbf16>
    %40 = vector.shape_cast %39 : vector<1x32x96xbf16> to vector<32x96xbf16>
    %cst_23 = arith.constant dense<0.000000e+00> : vector<8x96xf32>
    %41 = tpu.matmul %38, %40, %cst_23 {dimension_numbers = #tpu.dot_dimension_numbers<[1], [0], [0], [1], [0, 0, 1, 1], [], []>} : vector<8x32xbf16>, vector<32x96xbf16>, vector<8x96xf32> -> vector<8x96xf32>
    %c0_24 = arith.constant 0 : index
    %c0_25 = arith.constant 0 : index
    %c0_26 = arith.constant 0 : index
    %42 = vector.load %arg8[%c0_24, %c0_25, %c0_26] : memref<2x1x96xf32, #tpu.memory_space<vmem>>, vector<1x1x96xf32>
    %43 = vector.shape_cast %42 : vector<1x1x96xf32> to vector<1x96xf32>
    %44 = vector.broadcast %43 : vector<1x96xf32> to vector<8x96xf32>
    %45 = arith.addf %41, %44 : vector<8x96xf32>
    %46 = vector.extract_strided_slice %45 {offsets = [0, 0], sizes = [8, 32], strides = [1, 1]} : vector<8x96xf32> to vector<8x32xf32>
    %cst_27 = arith.constant 2.500000e-01 : f32
    %47 = vector.broadcast %cst_27 : f32 to vector<8x32xf32>
    %48 = arith.mulf %46, %47 : vector<8x32xf32>
    %49 = vector.extract_strided_slice %45 {offsets = [0, 32], sizes = [8, 32], strides = [1, 1]} : vector<8x96xf32> to vector<8x32xf32>
    %50 = vector.extract_strided_slice %45 {offsets = [0, 64], sizes = [8, 32], strides = [1, 1]} : vector<8x96xf32> to vector<8x32xf32>
    %51 = vector.extract_strided_slice %48 {offsets = [0, 0], sizes = [8, 16], strides = [1, 1]} : vector<8x32xf32> to vector<8x16xf32>
    %52 = vector.shape_cast %51 : vector<8x16xf32> to vector<1x8x16xf32>
    %53 = vector.extract_strided_slice %48 {offsets = [0, 16], sizes = [8, 16], strides = [1, 1]} : vector<8x32xf32> to vector<8x16xf32>
    %54 = vector.shape_cast %53 : vector<8x16xf32> to vector<1x8x16xf32>
    %55 = tpu.concatenate %52, %54 in 0 : vector<1x8x16xf32>, vector<1x8x16xf32> -> vector<2x8x16xf32>
    %56 = arith.truncf %55 : vector<2x8x16xf32> to vector<2x8x16xbf16>
    %57 = vector.extract_strided_slice %49 {offsets = [0, 0], sizes = [8, 16], strides = [1, 1]} : vector<8x32xf32> to vector<8x16xf32>
    %58 = vector.shape_cast %57 : vector<8x16xf32> to vector<1x8x16xf32>
    %59 = vector.extract_strided_slice %49 {offsets = [0, 16], sizes = [8, 16], strides = [1, 1]} : vector<8x32xf32> to vector<8x16xf32>
    %60 = vector.shape_cast %59 : vector<8x16xf32> to vector<1x8x16xf32>
    %61 = tpu.concatenate %58, %60 in 0 : vector<1x8x16xf32>, vector<1x8x16xf32> -> vector<2x8x16xf32>
    %62 = arith.truncf %61 : vector<2x8x16xf32> to vector<2x8x16xbf16>
    %63 = vector.extract_strided_slice %50 {offsets = [0, 0], sizes = [8, 16], strides = [1, 1]} : vector<8x32xf32> to vector<8x16xf32>
    %64 = vector.shape_cast %63 : vector<8x16xf32> to vector<1x8x16xf32>
    %65 = vector.extract_strided_slice %50 {offsets = [0, 16], sizes = [8, 16], strides = [1, 1]} : vector<8x32xf32> to vector<8x16xf32>
    %66 = vector.shape_cast %65 : vector<8x16xf32> to vector<1x8x16xf32>
    %67 = tpu.concatenate %64, %66 in 0 : vector<1x8x16xf32>, vector<1x8x16xf32> -> vector<2x8x16xf32>
    %68 = arith.truncf %67 : vector<2x8x16xf32> to vector<2x8x16xbf16>
    "tpu.trace_start"() <{level = 10 : i32, message = "nqd,nkd->nqk"}> : () -> ()
    %cst_28 = arith.constant dense<0.000000e+00> : vector<2x8x8xf32>
    %69 = tpu.matmul %56, %62, %cst_28 {dimension_numbers = #tpu.dot_dimension_numbers<[2], [2], [1], [1], [0, 0, 0, 1, 1, 1], [0], [0]>} : vector<2x8x16xbf16>, vector<2x8x16xbf16>, vector<2x8x8xf32> -> vector<2x8x8xf32>
    "tpu.trace_stop"() : () -> ()
    %70 = vector.broadcast %37 : vector<1x1x8xf32> to vector<2x8x8xf32>
    %71 = arith.addf %69, %70 : vector<2x8x8xf32>
    %cst_29 = arith.constant dense<0xFF800000> : vector<2x8xf32>
    %72 = vector.multi_reduction <maximumf>, %71, %cst_29 [2] : vector<2x8x8xf32> to vector<2x8xf32>
    %73 = vector.shape_cast %72 : vector<2x8xf32> to vector<2x8x1xf32>
    %74 = vector.broadcast %73 : vector<2x8x1xf32> to vector<2x8x8xf32>
    %75 = arith.subf %71, %74 : vector<2x8x8xf32>
    %76 = math.exp %75 : vector<2x8x8xf32>
    %cst_30 = arith.constant dense<0.000000e+00> : vector<2x8xf32>
    %77 = vector.multi_reduction <add>, %76, %cst_30 [2] : vector<2x8x8xf32> to vector<2x8xf32>
    %78 = vector.shape_cast %77 : vector<2x8xf32> to vector<2x8x1xf32>
    %79 = tpu.reciprocal %78 {approx = true} : vector<2x8x1xf32> -> vector<2x8x1xf32>
    %80 = vector.broadcast %79 : vector<2x8x1xf32> to vector<2x8x8xf32>
    %81 = arith.mulf %76, %80 : vector<2x8x8xf32>
    %82 = arith.truncf %81 : vector<2x8x8xf32> to vector<2x8x8xbf16>
    "tpu.trace_start"() <{level = 10 : i32, message = "nqk,nkd->nqd"}> : () -> ()
    %cst_31 = arith.constant dense<0.000000e+00> : vector<2x8x16xf32>
    %83 = tpu.matmul %82, %68, %cst_31 {dimension_numbers = #tpu.dot_dimension_numbers<[2], [1], [1], [2], [0, 0, 0, 1, 1, 2], [0], [0]>} : vector<2x8x8xbf16>, vector<2x8x16xbf16>, vector<2x8x16xf32> -> vector<2x8x16xf32>
    "tpu.trace_stop"() : () -> ()
    %84 = vector.extract_strided_slice %83 {offsets = [0, 0, 0], sizes = [1, 8, 16], strides = [1, 1, 1]} : vector<2x8x16xf32> to vector<1x8x16xf32>
    %85 = vector.shape_cast %84 : vector<1x8x16xf32> to vector<8x16xf32>
    %86 = vector.extract_strided_slice %83 {offsets = [1, 0, 0], sizes = [1, 8, 16], strides = [1, 1, 1]} : vector<2x8x16xf32> to vector<1x8x16xf32>
    %87 = vector.shape_cast %86 : vector<1x8x16xf32> to vector<8x16xf32>
    %88 = tpu.concatenate %85, %87 in 1 : vector<8x16xf32>, vector<8x16xf32> -> vector<8x32xf32>
    %89 = arith.truncf %88 : vector<8x32xf32> to vector<8x32xbf16>
    %c0_32 = arith.constant 0 : index
    %c0_33 = arith.constant 0 : index
    %c0_34 = arith.constant 0 : index
    %90 = vector.load %arg9[%c0_32, %c0_33, %c0_34] : memref<2x32x32xbf16, #tpu.memory_space<vmem>>, vector<1x32x32xbf16>
    %91 = vector.shape_cast %90 : vector<1x32x32xbf16> to vector<32x32xbf16>
    %cst_35 = arith.constant dense<0.000000e+00> : vector<8x32xf32>
    %92 = tpu.matmul %89, %91, %cst_35 {dimension_numbers = #tpu.dot_dimension_numbers<[1], [0], [0], [1], [0, 0, 1, 1], [], []>} : vector<8x32xbf16>, vector<32x32xbf16>, vector<8x32xf32> -> vector<8x32xf32>
    %c0_36 = arith.constant 0 : index
    %c0_37 = arith.constant 0 : index
    %c0_38 = arith.constant 0 : index
    %93 = vector.load %arg10[%c0_36, %c0_37, %c0_38] : memref<2x1x32xf32, #tpu.memory_space<vmem>>, vector<1x1x32xf32>
    %94 = vector.shape_cast %93 : vector<1x1x32xf32> to vector<1x32xf32>
    %95 = vector.broadcast %94 : vector<1x32xf32> to vector<8x32xf32>
    %96 = arith.addf %92, %95 : vector<8x32xf32>
    %97 = arith.addf %30, %96 : vector<8x32xf32>
    %c0_39 = arith.constant 0 : index
    %c0_40 = arith.constant 0 : index
    %c0_41 = arith.constant 0 : index
    %98 = vector.load %arg11[%c0_39, %c0_40, %c0_41] : memref<2x1x32xf32, #tpu.memory_space<vmem>>, vector<1x1x32xf32>
    %99 = vector.shape_cast %98 : vector<1x1x32xf32> to vector<1x32xf32>
    %c0_42 = arith.constant 0 : index
    %c0_43 = arith.constant 0 : index
    %c0_44 = arith.constant 0 : index
    %100 = vector.load %arg12[%c0_42, %c0_43, %c0_44] : memref<2x1x32xf32, #tpu.memory_space<vmem>>, vector<1x1x32xf32>
    %101 = vector.shape_cast %100 : vector<1x1x32xf32> to vector<1x32xf32>
    %cst_45 = arith.constant dense<0.000000e+00> : vector<8xf32>
    %102 = vector.multi_reduction <add>, %97, %cst_45 [1] : vector<8x32xf32> to vector<8xf32>
    %103 = vector.shape_cast %102 : vector<8xf32> to vector<8x1xf32>
    %cst_46 = arith.constant 3.200000e+01 : f32
    %104 = vector.broadcast %cst_46 : f32 to vector<8x1xf32>
    %105 = arith.divf %103, %104 : vector<8x1xf32>
    %106 = vector.broadcast %105 : vector<8x1xf32> to vector<8x32xf32>
    %107 = arith.subf %97, %106 : vector<8x32xf32>
    %108 = arith.mulf %107, %107 : vector<8x32xf32>
    %cst_47 = arith.constant dense<0.000000e+00> : vector<8xf32>
    %109 = vector.multi_reduction <add>, %108, %cst_47 [1] : vector<8x32xf32> to vector<8xf32>
    %110 = vector.shape_cast %109 : vector<8xf32> to vector<8x1xf32>
    %cst_48 = arith.constant 3.200000e+01 : f32
    %111 = vector.broadcast %cst_48 : f32 to vector<8x1xf32>
    %112 = arith.divf %110, %111 : vector<8x1xf32>
    %113 = vector.broadcast %105 : vector<8x1xf32> to vector<8x32xf32>
    %114 = arith.subf %97, %113 : vector<8x32xf32>
    %cst_49 = arith.constant 9.99999996E-13 : f32
    %115 = vector.broadcast %cst_49 : f32 to vector<8x1xf32>
    %116 = arith.addf %112, %115 : vector<8x1xf32>
    %117 = math.rsqrt %116 : vector<8x1xf32>
    %118 = vector.broadcast %117 : vector<8x1xf32> to vector<8x32xf32>
    %119 = arith.mulf %114, %118 : vector<8x32xf32>
    %120 = vector.broadcast %99 : vector<1x32xf32> to vector<8x32xf32>
    %121 = arith.mulf %119, %120 : vector<8x32xf32>
    %122 = vector.broadcast %101 : vector<1x32xf32> to vector<8x32xf32>
    %123 = arith.addf %121, %122 : vector<8x32xf32>
    %124 = arith.truncf %123 : vector<8x32xf32> to vector<8x32xbf16>
    %c0_50 = arith.constant 0 : index
    %c0_51 = arith.constant 0 : index
    %c0_52 = arith.constant 0 : index
    %125 = vector.load %arg13[%c0_50, %c0_51, %c0_52] : memref<2x32x64xbf16, #tpu.memory_space<vmem>>, vector<1x32x64xbf16>
    %126 = vector.shape_cast %125 : vector<1x32x64xbf16> to vector<32x64xbf16>
    %cst_53 = arith.constant dense<0.000000e+00> : vector<8x64xf32>
    %127 = tpu.matmul %124, %126, %cst_53 {dimension_numbers = #tpu.dot_dimension_numbers<[1], [0], [0], [1], [0, 0, 1, 1], [], []>} : vector<8x32xbf16>, vector<32x64xbf16>, vector<8x64xf32> -> vector<8x64xf32>
    %c0_54 = arith.constant 0 : index
    %c0_55 = arith.constant 0 : index
    %c0_56 = arith.constant 0 : index
    %128 = vector.load %arg14[%c0_54, %c0_55, %c0_56] : memref<2x1x64xf32, #tpu.memory_space<vmem>>, vector<1x1x64xf32>
    %129 = vector.shape_cast %128 : vector<1x1x64xf32> to vector<1x64xf32>
    %130 = vector.broadcast %129 : vector<1x64xf32> to vector<8x64xf32>
    %131 = arith.addf %127, %130 : vector<8x64xf32>
    %132 = arith.mulf %131, %131 : vector<8x64xf32>
    %133 = arith.mulf %131, %132 : vector<8x64xf32>
    %cst_57 = arith.constant 4.471500e-02 : f32
    %134 = vector.broadcast %cst_57 : f32 to vector<8x64xf32>
    %135 = arith.mulf %134, %133 : vector<8x64xf32>
    %136 = arith.addf %131, %135 : vector<8x64xf32>
    %cst_58 = arith.constant 0.797884583 : f32
    %137 = vector.broadcast %cst_58 : f32 to vector<8x64xf32>
    %138 = arith.mulf %137, %136 : vector<8x64xf32>
    %139 = math.tanh %138 : vector<8x64xf32>
    %cst_59 = arith.constant 1.000000e+00 : f32
    %140 = vector.broadcast %cst_59 : f32 to vector<8x64xf32>
    %141 = arith.addf %140, %139 : vector<8x64xf32>
    %cst_60 = arith.constant 5.000000e-01 : f32
    %142 = vector.broadcast %cst_60 : f32 to vector<8x64xf32>
    %143 = arith.mulf %142, %141 : vector<8x64xf32>
    %144 = arith.mulf %131, %143 : vector<8x64xf32>
    %145 = arith.truncf %144 : vector<8x64xf32> to vector<8x64xbf16>
    %c0_61 = arith.constant 0 : index
    %c0_62 = arith.constant 0 : index
    %c0_63 = arith.constant 0 : index
    %146 = vector.load %arg15[%c0_61, %c0_62, %c0_63] : memref<2x64x32xbf16, #tpu.memory_space<vmem>>, vector<1x64x32xbf16>
    %147 = vector.shape_cast %146 : vector<1x64x32xbf16> to vector<64x32xbf16>
    %cst_64 = arith.constant dense<0.000000e+00> : vector<8x32xf32>
    %148 = tpu.matmul %145, %147, %cst_64 {dimension_numbers = #tpu.dot_dimension_numbers<[1], [0], [0], [1], [0, 0, 1, 1], [], []>} : vector<8x64xbf16>, vector<64x32xbf16>, vector<8x32xf32> -> vector<8x32xf32>
    %c0_65 = arith.constant 0 : index
    %c0_66 = arith.constant 0 : index
    %c0_67 = arith.constant 0 : index
    %149 = vector.load %arg16[%c0_65, %c0_66, %c0_67] : memref<2x1x32xf32, #tpu.memory_space<vmem>>, vector<1x1x32xf32>
    %150 = vector.shape_cast %149 : vector<1x1x32xf32> to vector<1x32xf32>
    %151 = vector.broadcast %150 : vector<1x32xf32> to vector<8x32xf32>
    %152 = arith.addf %148, %151 : vector<8x32xf32>
    %153 = arith.addf %123, %152 : vector<8x32xf32>
    %c0_68 = arith.constant 0 : index
    %c0_69 = arith.constant 0 : index
    %c0_70 = arith.constant 0 : index
    %154 = vector.load %arg17[%c0_68, %c0_69, %c0_70] : memref<2x1x32xf32, #tpu.memory_space<vmem>>, vector<1x1x32xf32>
    %155 = vector.shape_cast %154 : vector<1x1x32xf32> to vector<1x32xf32>
    %c0_71 = arith.constant 0 : index
    %c0_72 = arith.constant 0 : index
    %c0_73 = arith.constant 0 : index
    %156 = vector.load %arg18[%c0_71, %c0_72, %c0_73] : memref<2x1x32xf32, #tpu.memory_space<vmem>>, vector<1x1x32xf32>
    %157 = vector.shape_cast %156 : vector<1x1x32xf32> to vector<1x32xf32>
    %cst_74 = arith.constant dense<0.000000e+00> : vector<8xf32>
    %158 = vector.multi_reduction <add>, %153, %cst_74 [1] : vector<8x32xf32> to vector<8xf32>
    %159 = vector.shape_cast %158 : vector<8xf32> to vector<8x1xf32>
    %cst_75 = arith.constant 3.200000e+01 : f32
    %160 = vector.broadcast %cst_75 : f32 to vector<8x1xf32>
    %161 = arith.divf %159, %160 : vector<8x1xf32>
    %162 = vector.broadcast %161 : vector<8x1xf32> to vector<8x32xf32>
    %163 = arith.subf %153, %162 : vector<8x32xf32>
    %164 = arith.mulf %163, %163 : vector<8x32xf32>
    %cst_76 = arith.constant dense<0.000000e+00> : vector<8xf32>
    %165 = vector.multi_reduction <add>, %164, %cst_76 [1] : vector<8x32xf32> to vector<8xf32>
    %166 = vector.shape_cast %165 : vector<8xf32> to vector<8x1xf32>
    %cst_77 = arith.constant 3.200000e+01 : f32
    %167 = vector.broadcast %cst_77 : f32 to vector<8x1xf32>
    %168 = arith.divf %166, %167 : vector<8x1xf32>
    %169 = vector.broadcast %161 : vector<8x1xf32> to vector<8x32xf32>
    %170 = arith.subf %153, %169 : vector<8x32xf32>
    %cst_78 = arith.constant 9.99999996E-13 : f32
    %171 = vector.broadcast %cst_78 : f32 to vector<8x1xf32>
    %172 = arith.addf %168, %171 : vector<8x1xf32>
    %173 = math.rsqrt %172 : vector<8x1xf32>
    %174 = vector.broadcast %173 : vector<8x1xf32> to vector<8x32xf32>
    %175 = arith.mulf %170, %174 : vector<8x32xf32>
    %176 = vector.broadcast %155 : vector<1x32xf32> to vector<8x32xf32>
    %177 = arith.mulf %175, %176 : vector<8x32xf32>
    %178 = vector.broadcast %157 : vector<1x32xf32> to vector<8x32xf32>
    %179 = arith.addf %177, %178 : vector<8x32xf32>
    %180 = arith.truncf %179 : vector<8x32xf32> to vector<8x32xbf16>
    %c1 = arith.constant 1 : index
    %c0_79 = arith.constant 0 : index
    %c0_80 = arith.constant 0 : index
    %181 = vector.load %arg7[%c1, %c0_79, %c0_80] : memref<2x32x96xbf16, #tpu.memory_space<vmem>>, vector<1x32x96xbf16>
    %182 = vector.shape_cast %181 : vector<1x32x96xbf16> to vector<32x96xbf16>
    %cst_81 = arith.constant dense<0.000000e+00> : vector<8x96xf32>
    %183 = tpu.matmul %180, %182, %cst_81 {dimension_numbers = #tpu.dot_dimension_numbers<[1], [0], [0], [1], [0, 0, 1, 1], [], []>} : vector<8x32xbf16>, vector<32x96xbf16>, vector<8x96xf32> -> vector<8x96xf32>
    %c1_82 = arith.constant 1 : index
    %c0_83 = arith.constant 0 : index
    %c0_84 = arith.constant 0 : index
    %184 = vector.load %arg8[%c1_82, %c0_83, %c0_84] : memref<2x1x96xf32, #tpu.memory_space<vmem>>, vector<1x1x96xf32>
    %185 = vector.shape_cast %184 : vector<1x1x96xf32> to vector<1x96xf32>
    %186 = vector.broadcast %185 : vector<1x96xf32> to vector<8x96xf32>
    %187 = arith.addf %183, %186 : vector<8x96xf32>
    %188 = vector.extract_strided_slice %187 {offsets = [0, 0], sizes = [8, 32], strides = [1, 1]} : vector<8x96xf32> to vector<8x32xf32>
    %cst_85 = arith.constant 2.500000e-01 : f32
    %189 = vector.broadcast %cst_85 : f32 to vector<8x32xf32>
    %190 = arith.mulf %188, %189 : vector<8x32xf32>
    %191 = vector.extract_strided_slice %187 {offsets = [0, 32], sizes = [8, 32], strides = [1, 1]} : vector<8x96xf32> to vector<8x32xf32>
    %192 = vector.extract_strided_slice %187 {offsets = [0, 64], sizes = [8, 32], strides = [1, 1]} : vector<8x96xf32> to vector<8x32xf32>
    %193 = vector.extract_strided_slice %190 {offsets = [0, 0], sizes = [8, 16], strides = [1, 1]} : vector<8x32xf32> to vector<8x16xf32>
    %194 = vector.shape_cast %193 : vector<8x16xf32> to vector<1x8x16xf32>
    %195 = vector.extract_strided_slice %190 {offsets = [0, 16], sizes = [8, 16], strides = [1, 1]} : vector<8x32xf32> to vector<8x16xf32>
    %196 = vector.shape_cast %195 : vector<8x16xf32> to vector<1x8x16xf32>
    %197 = tpu.concatenate %194, %196 in 0 : vector<1x8x16xf32>, vector<1x8x16xf32> -> vector<2x8x16xf32>
    %198 = arith.truncf %197 : vector<2x8x16xf32> to vector<2x8x16xbf16>
    %199 = vector.extract_strided_slice %191 {offsets = [0, 0], sizes = [8, 16], strides = [1, 1]} : vector<8x32xf32> to vector<8x16xf32>
    %200 = vector.shape_cast %199 : vector<8x16xf32> to vector<1x8x16xf32>
    %201 = vector.extract_strided_slice %191 {offsets = [0, 16], sizes = [8, 16], strides = [1, 1]} : vector<8x32xf32> to vector<8x16xf32>
    %202 = vector.shape_cast %201 : vector<8x16xf32> to vector<1x8x16xf32>
    %203 = tpu.concatenate %200, %202 in 0 : vector<1x8x16xf32>, vector<1x8x16xf32> -> vector<2x8x16xf32>
    %204 = arith.truncf %203 : vector<2x8x16xf32> to vector<2x8x16xbf16>
    %205 = vector.extract_strided_slice %192 {offsets = [0, 0], sizes = [8, 16], strides = [1, 1]} : vector<8x32xf32> to vector<8x16xf32>
    %206 = vector.shape_cast %205 : vector<8x16xf32> to vector<1x8x16xf32>
    %207 = vector.extract_strided_slice %192 {offsets = [0, 16], sizes = [8, 16], strides = [1, 1]} : vector<8x32xf32> to vector<8x16xf32>
    %208 = vector.shape_cast %207 : vector<8x16xf32> to vector<1x8x16xf32>
    %209 = tpu.concatenate %206, %208 in 0 : vector<1x8x16xf32>, vector<1x8x16xf32> -> vector<2x8x16xf32>
    %210 = arith.truncf %209 : vector<2x8x16xf32> to vector<2x8x16xbf16>
    "tpu.trace_start"() <{level = 10 : i32, message = "nqd,nkd->nqk"}> : () -> ()
    %cst_86 = arith.constant dense<0.000000e+00> : vector<2x8x8xf32>
    %211 = tpu.matmul %198, %204, %cst_86 {dimension_numbers = #tpu.dot_dimension_numbers<[2], [2], [1], [1], [0, 0, 0, 1, 1, 1], [0], [0]>} : vector<2x8x16xbf16>, vector<2x8x16xbf16>, vector<2x8x8xf32> -> vector<2x8x8xf32>
    "tpu.trace_stop"() : () -> ()
    %212 = vector.broadcast %37 : vector<1x1x8xf32> to vector<2x8x8xf32>
    %213 = arith.addf %211, %212 : vector<2x8x8xf32>
    %cst_87 = arith.constant dense<0xFF800000> : vector<2x8xf32>
    %214 = vector.multi_reduction <maximumf>, %213, %cst_87 [2] : vector<2x8x8xf32> to vector<2x8xf32>
    %215 = vector.shape_cast %214 : vector<2x8xf32> to vector<2x8x1xf32>
    %216 = vector.broadcast %215 : vector<2x8x1xf32> to vector<2x8x8xf32>
    %217 = arith.subf %213, %216 : vector<2x8x8xf32>
    %218 = math.exp %217 : vector<2x8x8xf32>
    %cst_88 = arith.constant dense<0.000000e+00> : vector<2x8xf32>
    %219 = vector.multi_reduction <add>, %218, %cst_88 [2] : vector<2x8x8xf32> to vector<2x8xf32>
    %220 = vector.shape_cast %219 : vector<2x8xf32> to vector<2x8x1xf32>
    %221 = tpu.reciprocal %220 {approx = true} : vector<2x8x1xf32> -> vector<2x8x1xf32>
    %222 = vector.broadcast %221 : vector<2x8x1xf32> to vector<2x8x8xf32>
    %223 = arith.mulf %218, %222 : vector<2x8x8xf32>
    %224 = arith.truncf %223 : vector<2x8x8xf32> to vector<2x8x8xbf16>
    "tpu.trace_start"() <{level = 10 : i32, message = "nqk,nkd->nqd"}> : () -> ()
    %cst_89 = arith.constant dense<0.000000e+00> : vector<2x8x16xf32>
    %225 = tpu.matmul %224, %210, %cst_89 {dimension_numbers = #tpu.dot_dimension_numbers<[2], [1], [1], [2], [0, 0, 0, 1, 1, 2], [0], [0]>} : vector<2x8x8xbf16>, vector<2x8x16xbf16>, vector<2x8x16xf32> -> vector<2x8x16xf32>
    "tpu.trace_stop"() : () -> ()
    %226 = vector.extract_strided_slice %225 {offsets = [0, 0, 0], sizes = [1, 8, 16], strides = [1, 1, 1]} : vector<2x8x16xf32> to vector<1x8x16xf32>
    %227 = vector.shape_cast %226 : vector<1x8x16xf32> to vector<8x16xf32>
    %228 = vector.extract_strided_slice %225 {offsets = [1, 0, 0], sizes = [1, 8, 16], strides = [1, 1, 1]} : vector<2x8x16xf32> to vector<1x8x16xf32>
    %229 = vector.shape_cast %228 : vector<1x8x16xf32> to vector<8x16xf32>
    %230 = tpu.concatenate %227, %229 in 1 : vector<8x16xf32>, vector<8x16xf32> -> vector<8x32xf32>
    %231 = arith.truncf %230 : vector<8x32xf32> to vector<8x32xbf16>
    %c1_90 = arith.constant 1 : index
    %c0_91 = arith.constant 0 : index
    %c0_92 = arith.constant 0 : index
    %232 = vector.load %arg9[%c1_90, %c0_91, %c0_92] : memref<2x32x32xbf16, #tpu.memory_space<vmem>>, vector<1x32x32xbf16>
    %233 = vector.shape_cast %232 : vector<1x32x32xbf16> to vector<32x32xbf16>
    %cst_93 = arith.constant dense<0.000000e+00> : vector<8x32xf32>
    %234 = tpu.matmul %231, %233, %cst_93 {dimension_numbers = #tpu.dot_dimension_numbers<[1], [0], [0], [1], [0, 0, 1, 1], [], []>} : vector<8x32xbf16>, vector<32x32xbf16>, vector<8x32xf32> -> vector<8x32xf32>
    %c1_94 = arith.constant 1 : index
    %c0_95 = arith.constant 0 : index
    %c0_96 = arith.constant 0 : index
    %235 = vector.load %arg10[%c1_94, %c0_95, %c0_96] : memref<2x1x32xf32, #tpu.memory_space<vmem>>, vector<1x1x32xf32>
    %236 = vector.shape_cast %235 : vector<1x1x32xf32> to vector<1x32xf32>
    %237 = vector.broadcast %236 : vector<1x32xf32> to vector<8x32xf32>
    %238 = arith.addf %234, %237 : vector<8x32xf32>
    %239 = arith.addf %179, %238 : vector<8x32xf32>
    %c1_97 = arith.constant 1 : index
    %c0_98 = arith.constant 0 : index
    %c0_99 = arith.constant 0 : index
    %240 = vector.load %arg11[%c1_97, %c0_98, %c0_99] : memref<2x1x32xf32, #tpu.memory_space<vmem>>, vector<1x1x32xf32>
    %241 = vector.shape_cast %240 : vector<1x1x32xf32> to vector<1x32xf32>
    %c1_100 = arith.constant 1 : index
    %c0_101 = arith.constant 0 : index
    %c0_102 = arith.constant 0 : index
    %242 = vector.load %arg12[%c1_100, %c0_101, %c0_102] : memref<2x1x32xf32, #tpu.memory_space<vmem>>, vector<1x1x32xf32>
    %243 = vector.shape_cast %242 : vector<1x1x32xf32> to vector<1x32xf32>
    %cst_103 = arith.constant dense<0.000000e+00> : vector<8xf32>
    %244 = vector.multi_reduction <add>, %239, %cst_103 [1] : vector<8x32xf32> to vector<8xf32>
    %245 = vector.shape_cast %244 : vector<8xf32> to vector<8x1xf32>
    %cst_104 = arith.constant 3.200000e+01 : f32
    %246 = vector.broadcast %cst_104 : f32 to vector<8x1xf32>
    %247 = arith.divf %245, %246 : vector<8x1xf32>
    %248 = vector.broadcast %247 : vector<8x1xf32> to vector<8x32xf32>
    %249 = arith.subf %239, %248 : vector<8x32xf32>
    %250 = arith.mulf %249, %249 : vector<8x32xf32>
    %cst_105 = arith.constant dense<0.000000e+00> : vector<8xf32>
    %251 = vector.multi_reduction <add>, %250, %cst_105 [1] : vector<8x32xf32> to vector<8xf32>
    %252 = vector.shape_cast %251 : vector<8xf32> to vector<8x1xf32>
    %cst_106 = arith.constant 3.200000e+01 : f32
    %253 = vector.broadcast %cst_106 : f32 to vector<8x1xf32>
    %254 = arith.divf %252, %253 : vector<8x1xf32>
    %255 = vector.broadcast %247 : vector<8x1xf32> to vector<8x32xf32>
    %256 = arith.subf %239, %255 : vector<8x32xf32>
    %cst_107 = arith.constant 9.99999996E-13 : f32
    %257 = vector.broadcast %cst_107 : f32 to vector<8x1xf32>
    %258 = arith.addf %254, %257 : vector<8x1xf32>
    %259 = math.rsqrt %258 : vector<8x1xf32>
    %260 = vector.broadcast %259 : vector<8x1xf32> to vector<8x32xf32>
    %261 = arith.mulf %256, %260 : vector<8x32xf32>
    %262 = vector.broadcast %241 : vector<1x32xf32> to vector<8x32xf32>
    %263 = arith.mulf %261, %262 : vector<8x32xf32>
    %264 = vector.broadcast %243 : vector<1x32xf32> to vector<8x32xf32>
    %265 = arith.addf %263, %264 : vector<8x32xf32>
    %266 = arith.truncf %265 : vector<8x32xf32> to vector<8x32xbf16>
    %c1_108 = arith.constant 1 : index
    %c0_109 = arith.constant 0 : index
    %c0_110 = arith.constant 0 : index
    %267 = vector.load %arg13[%c1_108, %c0_109, %c0_110] : memref<2x32x64xbf16, #tpu.memory_space<vmem>>, vector<1x32x64xbf16>
    %268 = vector.shape_cast %267 : vector<1x32x64xbf16> to vector<32x64xbf16>
    %cst_111 = arith.constant dense<0.000000e+00> : vector<8x64xf32>
    %269 = tpu.matmul %266, %268, %cst_111 {dimension_numbers = #tpu.dot_dimension_numbers<[1], [0], [0], [1], [0, 0, 1, 1], [], []>} : vector<8x32xbf16>, vector<32x64xbf16>, vector<8x64xf32> -> vector<8x64xf32>
    %c1_112 = arith.constant 1 : index
    %c0_113 = arith.constant 0 : index
    %c0_114 = arith.constant 0 : index
    %270 = vector.load %arg14[%c1_112, %c0_113, %c0_114] : memref<2x1x64xf32, #tpu.memory_space<vmem>>, vector<1x1x64xf32>
    %271 = vector.shape_cast %270 : vector<1x1x64xf32> to vector<1x64xf32>
    %272 = vector.broadcast %271 : vector<1x64xf32> to vector<8x64xf32>
    %273 = arith.addf %269, %272 : vector<8x64xf32>
    %274 = arith.mulf %273, %273 : vector<8x64xf32>
    %275 = arith.mulf %273, %274 : vector<8x64xf32>
    %cst_115 = arith.constant 4.471500e-02 : f32
    %276 = vector.broadcast %cst_115 : f32 to vector<8x64xf32>
    %277 = arith.mulf %276, %275 : vector<8x64xf32>
    %278 = arith.addf %273, %277 : vector<8x64xf32>
    %cst_116 = arith.constant 0.797884583 : f32
    %279 = vector.broadcast %cst_116 : f32 to vector<8x64xf32>
    %280 = arith.mulf %279, %278 : vector<8x64xf32>
    %281 = math.tanh %280 : vector<8x64xf32>
    %cst_117 = arith.constant 1.000000e+00 : f32
    %282 = vector.broadcast %cst_117 : f32 to vector<8x64xf32>
    %283 = arith.addf %282, %281 : vector<8x64xf32>
    %cst_118 = arith.constant 5.000000e-01 : f32
    %284 = vector.broadcast %cst_118 : f32 to vector<8x64xf32>
    %285 = arith.mulf %284, %283 : vector<8x64xf32>
    %286 = arith.mulf %273, %285 : vector<8x64xf32>
    %287 = arith.truncf %286 : vector<8x64xf32> to vector<8x64xbf16>
    %c1_119 = arith.constant 1 : index
    %c0_120 = arith.constant 0 : index
    %c0_121 = arith.constant 0 : index
    %288 = vector.load %arg15[%c1_119, %c0_120, %c0_121] : memref<2x64x32xbf16, #tpu.memory_space<vmem>>, vector<1x64x32xbf16>
    %289 = vector.shape_cast %288 : vector<1x64x32xbf16> to vector<64x32xbf16>
    %cst_122 = arith.constant dense<0.000000e+00> : vector<8x32xf32>
    %290 = tpu.matmul %287, %289, %cst_122 {dimension_numbers = #tpu.dot_dimension_numbers<[1], [0], [0], [1], [0, 0, 1, 1], [], []>} : vector<8x64xbf16>, vector<64x32xbf16>, vector<8x32xf32> -> vector<8x32xf32>
    %c1_123 = arith.constant 1 : index
    %c0_124 = arith.constant 0 : index
    %c0_125 = arith.constant 0 : index
    %291 = vector.load %arg16[%c1_123, %c0_124, %c0_125] : memref<2x1x32xf32, #tpu.memory_space<vmem>>, vector<1x1x32xf32>
    %292 = vector.shape_cast %291 : vector<1x1x32xf32> to vector<1x32xf32>
    %293 = vector.broadcast %292 : vector<1x32xf32> to vector<8x32xf32>
    %294 = arith.addf %290, %293 : vector<8x32xf32>
    %295 = arith.addf %265, %294 : vector<8x32xf32>
    %c1_126 = arith.constant 1 : index
    %c0_127 = arith.constant 0 : index
    %c0_128 = arith.constant 0 : index
    %296 = vector.load %arg17[%c1_126, %c0_127, %c0_128] : memref<2x1x32xf32, #tpu.memory_space<vmem>>, vector<1x1x32xf32>
    %297 = vector.shape_cast %296 : vector<1x1x32xf32> to vector<1x32xf32>
    %c1_129 = arith.constant 1 : index
    %c0_130 = arith.constant 0 : index
    %c0_131 = arith.constant 0 : index
    %298 = vector.load %arg18[%c1_129, %c0_130, %c0_131] : memref<2x1x32xf32, #tpu.memory_space<vmem>>, vector<1x1x32xf32>
    %299 = vector.shape_cast %298 : vector<1x1x32xf32> to vector<1x32xf32>
    %cst_132 = arith.constant dense<0.000000e+00> : vector<8xf32>
    %300 = vector.multi_reduction <add>, %295, %cst_132 [1] : vector<8x32xf32> to vector<8xf32>
    %301 = vector.shape_cast %300 : vector<8xf32> to vector<8x1xf32>
    %cst_133 = arith.constant 3.200000e+01 : f32
    %302 = vector.broadcast %cst_133 : f32 to vector<8x1xf32>
    %303 = arith.divf %301, %302 : vector<8x1xf32>
    %304 = vector.broadcast %303 : vector<8x1xf32> to vector<8x32xf32>
    %305 = arith.subf %295, %304 : vector<8x32xf32>
    %306 = arith.mulf %305, %305 : vector<8x32xf32>
    %cst_134 = arith.constant dense<0.000000e+00> : vector<8xf32>
    %307 = vector.multi_reduction <add>, %306, %cst_134 [1] : vector<8x32xf32> to vector<8xf32>
    %308 = vector.shape_cast %307 : vector<8xf32> to vector<8x1xf32>
    %cst_135 = arith.constant 3.200000e+01 : f32
    %309 = vector.broadcast %cst_135 : f32 to vector<8x1xf32>
    %310 = arith.divf %308, %309 : vector<8x1xf32>
    %311 = vector.broadcast %303 : vector<8x1xf32> to vector<8x32xf32>
    %312 = arith.subf %295, %311 : vector<8x32xf32>
    %cst_136 = arith.constant 9.99999996E-13 : f32
    %313 = vector.broadcast %cst_136 : f32 to vector<8x1xf32>
    %314 = arith.addf %310, %313 : vector<8x1xf32>
    %315 = math.rsqrt %314 : vector<8x1xf32>
    %316 = vector.broadcast %315 : vector<8x1xf32> to vector<8x32xf32>
    %317 = arith.mulf %312, %316 : vector<8x32xf32>
    %318 = vector.broadcast %297 : vector<1x32xf32> to vector<8x32xf32>
    %319 = arith.mulf %317, %318 : vector<8x32xf32>
    %320 = vector.broadcast %299 : vector<1x32xf32> to vector<8x32xf32>
    %321 = arith.addf %319, %320 : vector<8x32xf32>
    %c0_137 = arith.constant 0 : index
    %c0_138 = arith.constant 0 : index
    %c0_139 = arith.constant 0 : index
    %322 = vector.load %arg19[%c0_137, %c0_138, %c0_139] : memref<1x8x32xf32, #tpu.memory_space<vmem>>, vector<1x8x32xf32>
    %323 = vector.shape_cast %322 : vector<1x8x32xf32> to vector<8x32xf32>
    %324 = vector.shape_cast %321 : vector<8x32xf32> to vector<1x8x32xf32>
    tpu.vector_store %arg19[%c0_137, %c0_138, %c0_139], %324 {strides = array<i32>} : memref<1x8x32xf32, #tpu.memory_space<vmem>>, vector<1x8x32xf32>,
    return
  }
  func.func @transform_0(%arg0: i32) -> (i32, i32, i32) {
    %c0_i32 = arith.constant 0 : i32
    %c0_i32_0 = arith.constant 0 : i32
    %c0_i32_1 = arith.constant 0 : i32
    return %arg0, %c0_i32, %c0_i32_0 : i32, i32, i32
  }
  func.func @transform_1(%arg0: i32) -> (i32, i32) {
    %c0_i32 = arith.constant 0 : i32
    %c0_i32_0 = arith.constant 0 : i32
    %c0_i32_1 = arith.constant 0 : i32
    return %c0_i32, %c0_i32_0 : i32, i32
  }
  func.func @transform_2(%arg0: i32) -> (i32, i32, i32) {
    %c0_i32 = arith.constant 0 : i32
    %c0_i32_0 = arith.constant 0 : i32
    %c0_i32_1 = arith.constant 0 : i32
    return %arg0, %c0_i32, %c0_i32_0 : i32, i32, i32
  }
  func.func @transform_3(%arg0: i32) -> (i32, i32, i32) {
    %c0_i32 = arith.constant 0 : i32
    %c0_i32_0 = arith.constant 0 : i32
    %c0_i32_1 = arith.constant 0 : i32
    return %arg0, %c0_i32, %c0_i32_0 : i32, i32, i32
  }
  func.func @transform_4(%arg0: i32) -> (i32, i32) {
    %c0_i32 = arith.constant 0 : i32
    %c0_i32_0 = arith.constant 0 : i32
    %c0_i32_1 = arith.constant 0 : i32
    return %c0_i32, %c0_i32_0 : i32, i32
  }
  func.func @transform_5(%arg0: i32) -> (i32, i32) {
    %c0_i32 = arith.constant 0 : i32
    %c0_i32_0 = arith.constant 0 : i32
    %c0_i32_1 = arith.constant 0 : i32
    return %c0_i32, %c0_i32_0 : i32, i32
  }
  func.func @transform_6(%arg0: i32) -> (i32, i32, i32) {
    %c0_i32 = arith.constant 0 : i32
    %c0_i32_0 = arith.constant 0 : i32
    %c0_i32_1 = arith.constant 0 : i32
    %c0_i32_2 = arith.constant 0 : i32
    return %c0_i32, %c0_i32_0, %c0_i32_1 : i32, i32, i32
  }
  func.func @transform_7(%arg0: i32) -> (i32, i32, i32) {
    %c0_i32 = arith.constant 0 : i32
    %c0_i32_0 = arith.constant 0 : i32
    %c0_i32_1 = arith.constant 0 : i32
    %c0_i32_2 = arith.constant 0 : i32
    return %c0_i32, %c0_i32_0, %c0_i32_1 : i32, i32, i32
  }
  func.func @transform_8(%arg0: i32) -> (i32, i32, i32) {
    %c0_i32 = arith.constant 0 : i32
    %c0_i32_0 = arith.constant 0 : i32
    %c0_i32_1 = arith.constant 0 : i32
    %c0_i32_2 = arith.constant 0 : i32
    return %c0_i32, %c0_i32_0, %c0_i32_1 : i32, i32, i32
  }
  func.func @transform_9(%arg0: i32) -> (i32, i32, i32) {
    %c0_i32 = arith.constant 0 : i32
    %c0_i32_0 = arith.constant 0 : i32
    %c0_i32_1 = arith.constant 0 : i32
    %c0_i32_2 = arith.constant 0 : i32
    return %c0_i32, %c0_i32_0, %c0_i32_1 : i32, i32, i32
  }
  func.func @transform_10(%arg0: i32) -> (i32, i32, i32) {
    %c0_i32 = arith.constant 0 : i32
    %c0_i32_0 = arith.constant 0 : i32
    %c0_i32_1 = arith.constant 0 : i32
    %c0_i32_2 = arith.constant 0 : i32
    return %c0_i32, %c0_i32_0, %c0_i32_1 : i32, i32, i32
  }
  func.func @transform_11(%arg0: i32) -> (i32, i32, i32) {
    %c0_i32 = arith.constant 0 : i32
    %c0_i32_0 = arith.constant 0 : i32
    %c0_i32_1 = arith.constant 0 : i32
    %c0_i32_2 = arith.constant 0 : i32
    return %c0_i32, %c0_i32_0, %c0_i32_1 : i32, i32, i32
  }
  func.func @transform_12(%arg0: i32) -> (i32, i32, i32) {
    %c0_i32 = arith.constant 0 : i32
    %c0_i32_0 = arith.constant 0 : i32
    %c0_i32_1 = arith.constant 0 : i32
    %c0_i32_2 = arith.constant 0 : i32
    return %c0_i32, %c0_i32_0, %c0_i32_1 : i32, i32, i32
  }
  func.func @transform_13(%arg0: i32) -> (i32, i32, i32) {
    %c0_i32 = arith.constant 0 : i32
    %c0_i32_0 = arith.constant 0 : i32
    %c0_i32_1 = arith.constant 0 : i32
    %c0_i32_2 = arith.constant 0 : i32
    return %c0_i32, %c0_i32_0, %c0_i32_1 : i32, i32, i32
  }
  func.func @transform_14(%arg0: i32) -> (i32, i32, i32) {
    %c0_i32 = arith.constant 0 : i32
    %c0_i32_0 = arith.constant 0 : i32
    %c0_i32_1 = arith.constant 0 : i32
    %c0_i32_2 = arith.constant 0 : i32
    return %c0_i32, %c0_i32_0, %c0_i32_1 : i32, i32, i32
  }
  func.func @transform_15(%arg0: i32) -> (i32, i32, i32) {
    %c0_i32 = arith.constant 0 : i32
    %c0_i32_0 = arith.constant 0 : i32
    %c0_i32_1 = arith.constant 0 : i32
    %c0_i32_2 = arith.constant 0 : i32
    return %c0_i32, %c0_i32_0, %c0_i32_1 : i32, i32, i32
  }
  func.func @transform_16(%arg0: i32) -> (i32, i32, i32) {
    %c0_i32 = arith.constant 0 : i32
    %c0_i32_0 = arith.constant 0 : i32
    %c0_i32_1 = arith.constant 0 : i32
    %c0_i32_2 = arith.constant 0 : i32
    return %c0_i32, %c0_i32_0, %c0_i32_1 : i32, i32, i32
  }
  func.func @transform_17(%arg0: i32) -> (i32, i32, i32) {
    %c0_i32 = arith.constant 0 : i32
    %c0_i32_0 = arith.constant 0 : i32
    %c0_i32_1 = arith.constant 0 : i32
    %c0_i32_2 = arith.constant 0 : i32
    return %c0_i32, %c0_i32_0, %c0_i32_1 : i32, i32, i32
  }
  func.func @transform_18(%arg0: i32) -> (i32, i32, i32) {
    %c0_i32 = arith.constant 0 : i32
    %c0_i32_0 = arith.constant 0 : i32
    %c0_i32_1 = arith.constant 0 : i32
    return %arg0, %c0_i32, %c0_i32_0 : i32, i32, i32
  }
}

</mosaic_0001>

<llo_original>
// kernel: language_embedding_layer.1
$region0: #{language_embedding_layer.1}
  #allocation0 [shape = 'u32[]', space=smem, size = 0x4, offset = 0x4, fixed_abs, tag = 'smem constant byte address 0x4 - core index']
  #allocation1 [shape = 'u32[144,128]{1,0:T(1,128)}', space=vmem, size = 0x12000, scoped, tag = 'internal scratch']
  %s0 = inlined_call_operand.vmem [shape: f32[2,8,32], index: 0, kind: input, shape index: {}]
  %s1 = inlined_call_operand.vmem [shape: f32[8,32], index: 1, kind: input, shape index: {}]
  %s2 = inlined_call_operand.vmem [shape: f32[2,8,32], index: 2, kind: input, shape index: {}]
  %s3 = inlined_call_operand.vmem [shape: f32[2,1,8], index: 3, kind: input, shape index: {}]
  %s4 = inlined_call_operand.vmem [shape: f32[1,32], index: 4, kind: input, shape index: {}]
  %s5 = inlined_call_operand.vmem [shape: f32[1,32], index: 5, kind: input, shape index: {}]
  %s6 = inlined_call_operand.vmem [shape: bf16[2,32,96], index: 6, kind: input, shape index: {}]
  %s7 = inlined_call_operand.vmem [shape: f32[2,1,96], index: 7, kind: input, shape index: {}]
  %s8 = inlined_call_operand.vmem [shape: bf16[2,32,32], index: 8, kind: input, shape index: {}]
  %s9 = inlined_call_operand.vmem [shape: f32[2,1,32], index: 9, kind: input, shape index: {}]
  %s10 = inlined_call_operand.vmem [shape: f32[2,1,32], index: 10, kind: input, shape index: {}]
  %s11 = inlined_call_operand.vmem [shape: f32[2,1,32], index: 11, kind: input, shape index: {}]
  %s12 = inlined_call_operand.vmem [shape: bf16[2,32,64], index: 12, kind: input, shape index: {}]
  %s13 = inlined_call_operand.vmem [shape: f32[2,1,64], index: 13, kind: input, shape index: {}]
  %s14 = inlined_call_operand.vmem [shape: bf16[2,64,32], index: 14, kind: input, shape index: {}]
  %s15 = inlined_call_operand.vmem [shape: f32[2,1,32], index: 15, kind: input, shape index: {}]
  %s16 = inlined_call_operand.vmem [shape: f32[2,1,32], index: 16, kind: input, shape index: {}]
  %s17 = inlined_call_operand.vmem [shape: f32[2,1,32], index: 17, kind: input, shape index: {}]
  %s18 = inlined_call_operand.hbm [shape: f32[2,8,32], index: 18, kind: output, shape index: {}]
  %s19 = sld [smem:[#allocation0]]
  $region105: #{language_embedding_layer.1} parent=0
    _
  %s21 = ssub.s32 1, %s19
  %s22 = scalar_select 0, %s21, %s19
  $region1: #{language_embedding_layer.1} parent=0
    #allocation2 [shape = 'u8[8192]{0}', space=vmem, size = 0x2000, scoped, tag = 'output window, operand 0']
    #allocation3 [shape = 's32[2]{0}', space=sflag, size = 0x8, scoped, tag = 'scoped memory for language_embedding_layer.1']
    %23 = vsyncpa [#allocation3], 0
    %s24 = scalar_lea.sflag [#allocation3], 1
    %25 = vsyncpa %s24, 0
    loop: start=0, step=1, limit=4
    $region2: #{language_embedding_layer.1} parent=1 // loop_pre_header
      _
    $region3: #{language_embedding_layer.1} parent=1 // loop_header
      %s27 = sphi 0, %s31
      %p28 = scmp.ge.s32.totalorder %s27, 4
      %s37 = sphi 0, %s39
      %s40 = sphi 0, %s37
      %s41 = sphi 0, %s40
      %s57 = sphi 0, %s41
      %s61 = sphi 0, %s61
      %s63 = sphi 0, %s61
      %s64 = sphi 0, %s63
      %s78 = sphi 0, %s64
      %s84 = sphi 0, %s86
      %s87 = sphi 0, %s84
      %s88 = sphi 0, %s87
      %s104 = sphi 0, %s88
      %s110 = sphi 0, %s112
      %s113 = sphi 0, %s110
      %s114 = sphi 0, %s113
      %s130 = sphi 0, %s114
      %s134 = sphi 0, %s134
      %s136 = sphi 0, %s134
      %s137 = sphi 0, %s136
      %s151 = sphi 0, %s137
      %s155 = sphi 0, %s155
      %s157 = sphi 0, %s155
      %s158 = sphi 0, %s157
      %s172 = sphi 0, %s158
      %s176 = sphi 0, %s176
      %s178 = sphi 0, %s176
      %s179 = sphi 0, %s178
      %s193 = sphi 0, %s179
      %s197 = sphi 0, %s197
      %s199 = sphi 0, %s197
      %s200 = sphi 0, %s199
      %s214 = sphi 0, %s200
      %s218 = sphi 0, %s218
      %s220 = sphi 0, %s218
      %s221 = sphi 0, %s220
      %s235 = sphi 0, %s221
      %s239 = sphi 0, %s239
      %s241 = sphi 0, %s239
      %s242 = sphi 0, %s241
      %s256 = sphi 0, %s242
      %s260 = sphi 0, %s260
      %s262 = sphi 0, %s260
      %s263 = sphi 0, %s262
      %s277 = sphi 0, %s263
      %s281 = sphi 0, %s281
      %s283 = sphi 0, %s281
      %s284 = sphi 0, %s283
      %s298 = sphi 0, %s284
      %s302 = sphi 0, %s302
      %s304 = sphi 0, %s302
      %s305 = sphi 0, %s304
      %s319 = sphi 0, %s305
      %s323 = sphi 0, %s323
      %s325 = sphi 0, %s323
      %s326 = sphi 0, %s325
      %s340 = sphi 0, %s326
      %s344 = sphi 0, %s344
      %s346 = sphi 0, %s344
      %s347 = sphi 0, %s346
      %s361 = sphi 0, %s347
      %s365 = sphi 0, %s365
      %s367 = sphi 0, %s365
      %s368 = sphi 0, %s367
      %s382 = sphi 0, %s368
      %s386 = sphi 0, %s386
      %s388 = sphi 0, %s386
      %s389 = sphi 0, %s388
      %s403 = sphi 0, %s389
      %s407 = sphi 0, %s407
      %s409 = sphi 0, %s407
      %s410 = sphi 0, %s409
      %s424 = sphi 0, %s410
      %s430 = sphi 0, %s432
      %s433 = sphi 0, %s430
      %s434 = sphi 0, %s433
      %s450 = sphi 0, %s434
    $region4: #{language_embedding_layer.1} parent=1 // loop_header_branch
      %30 = sbr.rel (%p28) target = $region8
    $region5: #{language_embedding_layer.1} parent=1 // loop_body
      %s32 = ssub.s32 %s27, 1
      %s33 = ssub.s32 %s27, 2
      %s34 = sadd.s32 %s27, 1
      %s35 = ssub.s32 %s27, %s34
      %p36 = scmp.eq.s32.totalorder %s35, 0
      %s38 = sadd.s32 %s37, 1
      %s39 = scalar_select %p36, %s37, %s38
      %p42 = pneg %p36
      %p43 = scmp.eq.s32.totalorder %s27, 1
      %p44 = por %p42, %p43
      %p45 = scmp.ne.s32.totalorder %s37, %s40
      %p46 = scmp.eq.s32.totalorder %s27, 0
      %p47 = por %p45, %p46
      %p48 = scmp.ne.s32.totalorder %s37, %s40
      %p49 = scmp.eq.s32.totalorder %s32, 1
      %p50 = por %p48, %p49
      %p51 = scmp.ne.s32.totalorder %s40, %s41
      %p52 = scmp.eq.s32.totalorder %s32, 0
      %p53 = por %p51, %p52
      %p54 = scmp.ne.s32.totalorder %s40, %s41
      %p55 = scmp.eq.s32.totalorder %s33, 1
      %p56 = por %p54, %p55
      %p58 = scmp.ne.s32.totalorder %s41, %s57
      %p59 = scmp.eq.s32.totalorder %s33, 0
      %p60 = por %p58, %p59
      %s62 = sadd.s32 %s61, 1
      %p65 = scmp.eq.s32.totalorder %s27, 1
      %p66 = scmp.ne.s32.totalorder %s61, %s63
      %p67 = scmp.eq.s32.totalorder %s27, 0
      %p68 = por %p66, %p67
      %p69 = scmp.ne.s32.totalorder %s61, %s63
      %p70 = scmp.eq.s32.totalorder %s32, 1
      %p71 = por %p69, %p70
      %p72 = scmp.ne.s32.totalorder %s63, %s64
      %p73 = scmp.eq.s32.totalorder %s32, 0
      %p74 = por %p72, %p73
      %p75 = scmp.ne.s32.totalorder %s63, %s64
      %p76 = scmp.eq.s32.totalorder %s33, 1
      %p77 = por %p75, %p76
      %p79 = scmp.ne.s32.totalorder %s64, %s78
      %p80 = scmp.eq.s32.totalorder %s33, 0
      %p81 = por %p79, %p80
      %s82 = ssub.s32 %s27, %s34
      %p83 = scmp.eq.s32.totalorder %s82, 0
      %s85 = sadd.s32 %s84, 1
      %s86 = scalar_select %p83, %s84, %s85
      %p89 = pneg %p83
      %p90 = scmp.eq.s32.totalorder %s27, 1
      %p91 = por %p89, %p90
      %p92 = scmp.ne.s32.totalorder %s84, %s87
      %p93 = scmp.eq.s32.totalorder %s27, 0
      %p94 = por %p92, %p93
      %p95 = scmp.ne.s32.totalorder %s84, %s87
      %p96 = scmp.eq.s32.totalorder %s32, 1
      %p97 = por %p95, %p96
      %p98 = scmp.ne.s32.totalorder %s87, %s88
      %p99 = scmp.eq.s32.totalorder %s32, 0
      %p100 = por %p98, %p99
      %p101 = scmp.ne.s32.totalorder %s87, %s88
      %p102 = scmp.eq.s32.totalorder %s33, 1
      %p103 = por %p101, %p102
      %p105 = scmp.ne.s32.totalorder %s88, %s104
      %p106 = scmp.eq.s32.totalorder %s33, 0
      %p107 = por %p105, %p106
      %s108 = ssub.s32 %s27, %s34
      %p109 = scmp.eq.s32.totalorder %s108, 0
      %s111 = sadd.s32 %s110, 1
      %s112 = scalar_select %p109, %s110, %s111
      %p115 = pneg %p109
      %p116 = scmp.eq.s32.totalorder %s27, 1
      %p117 = por %p115, %p116
      %p118 = scmp.ne.s32.totalorder %s110, %s113
      %p119 = scmp.eq.s32.totalorder %s27, 0
      %p120 = por %p118, %p119
      %p121 = scmp.ne.s32.totalorder %s110, %s113
      %p122 = scmp.eq.s32.totalorder %s32, 1
      %p123 = por %p121, %p122
      %p124 = scmp.ne.s32.totalorder %s113, %s114
      %p125 = scmp.eq.s32.totalorder %s32, 0
      %p126 = por %p124, %p125
      %p127 = scmp.ne.s32.totalorder %s113, %s114
      %p128 = scmp.eq.s32.totalorder %s33, 1
      %p129 = por %p127, %p128
      %p131 = scmp.ne.s32.totalorder %s114, %s130
      %p132 = scmp.eq.s32.totalorder %s33, 0
      %p133 = por %p131, %p132
      %s135 = sadd.s32 %s134, 1
      %p138 = scmp.eq.s32.totalorder %s27, 1
      %p139 = scmp.ne.s32.totalorder %s134, %s136
      %p140 = scmp.eq.s32.totalorder %s27, 0
      %p141 = por %p139, %p140
      %p142 = scmp.ne.s32.totalorder %s134, %s136
      %p143 = scmp.eq.s32.totalorder %s32, 1
      %p144 = por %p142, %p143
      %p145 = scmp.ne.s32.totalorder %s136, %s137
      %p146 = scmp.eq.s32.totalorder %s32, 0
      %p147 = por %p145, %p146
      %p148 = scmp.ne.s32.totalorder %s136, %s137
      %p149 = scmp.eq.s32.totalorder %s33, 1
      %p150 = por %p148, %p149
      %p152 = scmp.ne.s32.totalorder %s137, %s151
      %p153 = scmp.eq.s32.totalorder %s33, 0
      %p154 = por %p152, %p153
      %s156 = sadd.s32 %s155, 1
      %p159 = scmp.eq.s32.totalorder %s27, 1
      %p160 = scmp.ne.s32.totalorder %s155, %s157
      %p161 = scmp.eq.s32.totalorder %s27, 0
      %p162 = por %p160, %p161
      %p163 = scmp.ne.s32.totalorder %s155, %s157
      %p164 = scmp.eq.s32.totalorder %s32, 1
      %p165 = por %p163, %p164
      %p166 = scmp.ne.s32.totalorder %s157, %s158
      %p167 = scmp.eq.s32.totalorder %s32, 0
      %p168 = por %p166, %p167
      %p169 = scmp.ne.s32.totalorder %s157, %s158
      %p170 = scmp.eq.s32.totalorder %s33, 1
      %p171 = por %p169, %p170
      %p173 = scmp.ne.s32.totalorder %s158, %s172
      %p174 = scmp.eq.s32.totalorder %s33, 0
      %p175 = por %p173, %p174
      %s177 = sadd.s32 %s176, 1
      %p180 = scmp.eq.s32.totalorder %s27, 1
      %p181 = scmp.ne.s32.totalorder %s176, %s178
      %p182 = scmp.eq.s32.totalorder %s27, 0
      %p183 = por %p181, %p182
      %p184 = scmp.ne.s32.totalorder %s176, %s178
      %p185 = scmp.eq.s32.totalorder %s32, 1
      %p186 = por %p184, %p185
      %p187 = scmp.ne.s32.totalorder %s178, %s179
      %p188 = scmp.eq.s32.totalorder %s32, 0
      %p189 = por %p187, %p188
      %p190 = scmp.ne.s32.totalorder %s178, %s179
      %p191 = scmp.eq.s32.totalorder %s33, 1
      %p192 = por %p190, %p191
      %p194 = scmp.ne.s32.totalorder %s179, %s193
      %p195 = scmp.eq.s32.totalorder %s33, 0
      %p196 = por %p194, %p195
      %s198 = sadd.s32 %s197, 1
      %p201 = scmp.eq.s32.totalorder %s27, 1
      %p202 = scmp.ne.s32.totalorder %s197, %s199
      %p203 = scmp.eq.s32.totalorder %s27, 0
      %p204 = por %p202, %p203
      %p205 = scmp.ne.s32.totalorder %s197, %s199
      %p206 = scmp.eq.s32.totalorder %s32, 1
      %p207 = por %p205, %p206
      %p208 = scmp.ne.s32.totalorder %s199, %s200
      %p209 = scmp.eq.s32.totalorder %s32, 0
      %p210 = por %p208, %p209
      %p211 = scmp.ne.s32.totalorder %s199, %s200
      %p212 = scmp.eq.s32.totalorder %s33, 1
      %p213 = por %p211, %p212
      %p215 = scmp.ne.s32.totalorder %s200, %s214
      %p216 = scmp.eq.s32.totalorder %s33, 0
      %p217 = por %p215, %p216
      %s219 = sadd.s32 %s218, 1
      %p222 = scmp.eq.s32.totalorder %s27, 1
      %p223 = scmp.ne.s32.totalorder %s218, %s220
      %p224 = scmp.eq.s32.totalorder %s27, 0
      %p225 = por %p223, %p224
      %p226 = scmp.ne.s32.totalorder %s218, %s220
      %p227 = scmp.eq.s32.totalorder %s32, 1
      %p228 = por %p226, %p227
      %p229 = scmp.ne.s32.totalorder %s220, %s221
      %p230 = scmp.eq.s32.totalorder %s32, 0
      %p231 = por %p229, %p230
      %p232 = scmp.ne.s32.totalorder %s220, %s221
      %p233 = scmp.eq.s32.totalorder %s33, 1
      %p234 = por %p232, %p233
      %p236 = scmp.ne.s32.totalorder %s221, %s235
      %p237 = scmp.eq.s32.totalorder %s33, 0
      %p238 = por %p236, %p237
      %s240 = sadd.s32 %s239, 1
      %p243 = scmp.eq.s32.totalorder %s27, 1
      %p244 = scmp.ne.s32.totalorder %s239, %s241
      %p245 = scmp.eq.s32.totalorder %s27, 0
      %p246 = por %p244, %p245
      %p247 = scmp.ne.s32.totalorder %s239, %s241
      %p248 = scmp.eq.s32.totalorder %s32, 1
      %p249 = por %p247, %p248
      %p250 = scmp.ne.s32.totalorder %s241, %s242
      %p251 = scmp.eq.s32.totalorder %s32, 0
      %p252 = por %p250, %p251
      %p253 = scmp.ne.s32.totalorder %s241, %s242
      %p254 = scmp.eq.s32.totalorder %s33, 1
      %p255 = por %p253, %p254
      %p257 = scmp.ne.s32.totalorder %s242, %s256
      %p258 = scmp.eq.s32.totalorder %s33, 0
      %p259 = por %p257, %p258
      %s261 = sadd.s32 %s260, 1
      %p264 = scmp.eq.s32.totalorder %s27, 1
      %p265 = scmp.ne.s32.totalorder %s260, %s262
      %p266 = scmp.eq.s32.totalorder %s27, 0
      %p267 = por %p265, %p266
      %p268 = scmp.ne.s32.totalorder %s260, %s262
      %p269 = scmp.eq.s32.totalorder %s32, 1
      %p270 = por %p268, %p269
      %p271 = scmp.ne.s32.totalorder %s262, %s263
      %p272 = scmp.eq.s32.totalorder %s32, 0
      %p273 = por %p271, %p272
      %p274 = scmp.ne.s32.totalorder %s262, %s263
      %p275 = scmp.eq.s32.totalorder %s33, 1
      %p276 = por %p274, %p275
      %p278 = scmp.ne.s32.totalorder %s263, %s277
      %p279 = scmp.eq.s32.totalorder %s33, 0
      %p280 = por %p278, %p279
      %s282 = sadd.s32 %s281, 1
      %p285 = scmp.eq.s32.totalorder %s27, 1
      %p286 = scmp.ne.s32.totalorder %s281, %s283
      %p287 = scmp.eq.s32.totalorder %s27, 0
      %p288 = por %p286, %p287
      %p289 = scmp.ne.s32.totalorder %s281, %s283
      %p290 = scmp.eq.s32.totalorder %s32, 1
      %p291 = por %p289, %p290
      %p292 = scmp.ne.s32.totalorder %s283, %s284
      %p293 = scmp.eq.s32.totalorder %s32, 0
      %p294 = por %p292, %p293
      %p295 = scmp.ne.s32.totalorder %s283, %s284
      %p296 = scmp.eq.s32.totalorder %s33, 1
      %p297 = por %p295, %p296
      %p299 = scmp.ne.s32.totalorder %s284, %s298
      %p300 = scmp.eq.s32.totalorder %s33, 0
      %p301 = por %p299, %p300
      %s303 = sadd.s32 %s302, 1
      %p306 = scmp.eq.s32.totalorder %s27, 1
      %p307 = scmp.ne.s32.totalorder %s302, %s304
      %p308 = scmp.eq.s32.totalorder %s27, 0
      %p309 = por %p307, %p308
      %p310 = scmp.ne.s32.totalorder %s302, %s304
      %p311 = scmp.eq.s32.totalorder %s32, 1
      %p312 = por %p310, %p311
      %p313 = scmp.ne.s32.totalorder %s304, %s305
      %p314 = scmp.eq.s32.totalorder %s32, 0
      %p315 = por %p313, %p314
      %p316 = scmp.ne.s32.totalorder %s304, %s305
      %p317 = scmp.eq.s32.totalorder %s33, 1
      %p318 = por %p316, %p317
      %p320 = scmp.ne.s32.totalorder %s305, %s319
      %p321 = scmp.eq.s32.totalorder %s33, 0
      %p322 = por %p320, %p321
      %s324 = sadd.s32 %s323, 1
      %p327 = scmp.eq.s32.totalorder %s27, 1
      %p328 = scmp.ne.s32.totalorder %s323, %s325
      %p329 = scmp.eq.s32.totalorder %s27, 0
      %p330 = por %p328, %p329
      %p331 = scmp.ne.s32.totalorder %s323, %s325
      %p332 = scmp.eq.s32.totalorder %s32, 1
      %p333 = por %p331, %p332
      %p334 = scmp.ne.s32.totalorder %s325, %s326
      %p335 = scmp.eq.s32.totalorder %s32, 0
      %p336 = por %p334, %p335
      %p337 = scmp.ne.s32.totalorder %s325, %s326
      %p338 = scmp.eq.s32.totalorder %s33, 1
      %p339 = por %p337, %p338
      %p341 = scmp.ne.s32.totalorder %s326, %s340
      %p342 = scmp.eq.s32.totalorder %s33, 0
      %p343 = por %p341, %p342
      %s345 = sadd.s32 %s344, 1
      %p348 = scmp.eq.s32.totalorder %s27, 1
      %p349 = scmp.ne.s32.totalorder %s344, %s346
      %p350 = scmp.eq.s32.totalorder %s27, 0
      %p351 = por %p349, %p350
      %p352 = scmp.ne.s32.totalorder %s344, %s346
      %p353 = scmp.eq.s32.totalorder %s32, 1
      %p354 = por %p352, %p353
      %p355 = scmp.ne.s32.totalorder %s346, %s347
      %p356 = scmp.eq.s32.totalorder %s32, 0
      %p357 = por %p355, %p356
      %p358 = scmp.ne.s32.totalorder %s346, %s347
      %p359 = scmp.eq.s32.totalorder %s33, 1
      %p360 = por %p358, %p359
      %p362 = scmp.ne.s32.totalorder %s347, %s361
      %p363 = scmp.eq.s32.totalorder %s33, 0
      %p364 = por %p362, %p363
      %s366 = sadd.s32 %s365, 1
      %p369 = scmp.eq.s32.totalorder %s27, 1
      %p370 = scmp.ne.s32.totalorder %s365, %s367
      %p371 = scmp.eq.s32.totalorder %s27, 0
      %p372 = por %p370, %p371
      %p373 = scmp.ne.s32.totalorder %s365, %s367
      %p374 = scmp.eq.s32.totalorder %s32, 1
      %p375 = por %p373, %p374
      %p376 = scmp.ne.s32.totalorder %s367, %s368
      %p377 = scmp.eq.s32.totalorder %s32, 0
      %p378 = por %p376, %p377
      %p379 = scmp.ne.s32.totalorder %s367, %s368
      %p380 = scmp.eq.s32.totalorder %s33, 1
      %p381 = por %p379, %p380
      %p383 = scmp.ne.s32.totalorder %s368, %s382
      %p384 = scmp.eq.s32.totalorder %s33, 0
      %p385 = por %p383, %p384
      %s387 = sadd.s32 %s386, 1
      %p390 = scmp.eq.s32.totalorder %s27, 1
      %p391 = scmp.ne.s32.totalorder %s386, %s388
      %p392 = scmp.eq.s32.totalorder %s27, 0
      %p393 = por %p391, %p392
      %p394 = scmp.ne.s32.totalorder %s386, %s388
      %p395 = scmp.eq.s32.totalorder %s32, 1
      %p396 = por %p394, %p395
      %p397 = scmp.ne.s32.totalorder %s388, %s389
      %p398 = scmp.eq.s32.totalorder %s32, 0
      %p399 = por %p397, %p398
      %p400 = scmp.ne.s32.totalorder %s388, %s389
      %p401 = scmp.eq.s32.totalorder %s33, 1
      %p402 = por %p400, %p401
      %p404 = scmp.ne.s32.totalorder %s389, %s403
      %p405 = scmp.eq.s32.totalorder %s33, 0
      %p406 = por %p404, %p405
      %s408 = sadd.s32 %s407, 1
      %p411 = scmp.eq.s32.totalorder %s27, 1
      %p412 = scmp.ne.s32.totalorder %s407, %s409
      %p413 = scmp.eq.s32.totalorder %s27, 0
      %p414 = por %p412, %p413
      %p415 = scmp.ne.s32.totalorder %s407, %s409
      %p416 = scmp.eq.s32.totalorder %s32, 1
      %p417 = por %p415, %p416
      %p418 = scmp.ne.s32.totalorder %s409, %s410
      %p419 = scmp.eq.s32.totalorder %s32, 0
      %p420 = por %p418, %p419
      %p421 = scmp.ne.s32.totalorder %s409, %s410
      %p422 = scmp.eq.s32.totalorder %s33, 1
      %p423 = por %p421, %p422
      %p425 = scmp.ne.s32.totalorder %s410, %s424
      %p426 = scmp.eq.s32.totalorder %s33, 0
      %p427 = por %p425, %p426
      %s428 = ssub.s32 %s27, %s34
      %p429 = scmp.eq.s32.totalorder %s428, 0
      %s431 = sadd.s32 %s430, 1
      %s432 = scalar_select %p429, %s430, %s431
      %p435 = pneg %p429
      %p436 = scmp.eq.s32.totalorder %s27, 1
      %p437 = por %p435, %p436
      %p438 = scmp.ne.s32.totalorder %s430, %s433
      %p439 = scmp.eq.s32.totalorder %s27, 0
      %p440 = por %p438, %p439
      %p441 = scmp.ne.s32.totalorder %s430, %s433
      %p442 = scmp.eq.s32.totalorder %s32, 1
      %p443 = por %p441, %p442
      %p444 = scmp.ne.s32.totalorder %s433, %s434
      %p445 = scmp.eq.s32.totalorder %s32, 0
      %p446 = por %p444, %p445
      %p447 = scmp.ne.s32.totalorder %s433, %s434
      %p448 = scmp.eq.s32.totalorder %s33, 1
      %p449 = por %p447, %p448
      %p451 = scmp.ne.s32.totalorder %s434, %s450
      %p452 = scmp.eq.s32.totalorder %s33, 0
      %p453 = por %p451, %p452
      %p454 = scmp.le.s32.totalorder 1, %s27
      %p455 = scmp.lt.s32.totalorder %s27, 3
      %p456 = pnand %p454, %p455
      %p457 = pneg %p456
      // Predicated region
      $region9: #{language_embedding_layer.1} parent=5 // pred_check
        _
      $region10: #{language_embedding_layer.1} parent=5 // pred_check_branch
        %459 = sbr.rel (%p456) target = $region12
      $region11: #{language_embedding_layer.1} parent=5 // pred_region
        %s460 = ssub.s32 %s27, 1
        // Predicated region
        $region13: #{language_embedding_layer.1} parent=11 // pred_check
          %p461 = pneg %p74
        $region14: #{language_embedding_layer.1} parent=11 // pred_check_branch
          %463 = sbr.rel (%p461) target = $region16
        $region15: #{language_embedding_layer.1} parent=11 // pred_region
          _
        $region16: #{language_embedding_layer.1} parent=11 // pred_fallthru
          _
        // Predicated region
        $region17: #{language_embedding_layer.1} parent=11 // pred_check
          %p464 = pneg %p147
        $region18: #{language_embedding_layer.1} parent=11 // pred_check_branch
          %466 = sbr.rel (%p464) target = $region20
        $region19: #{language_embedding_layer.1} parent=11 // pred_region
          _
        $region20: #{language_embedding_layer.1} parent=11 // pred_fallthru
          _
        // Predicated region
        $region21: #{language_embedding_layer.1} parent=11 // pred_check
          %p467 = pneg %p168
        $region22: #{language_embedding_layer.1} parent=11 // pred_check_branch
          %469 = sbr.rel (%p467) target = $region24
        $region23: #{language_embedding_layer.1} parent=11 // pred_region
          _
        $region24: #{language_embedding_layer.1} parent=11 // pred_fallthru
          _
        // Predicated region
        $region25: #{language_embedding_layer.1} parent=11 // pred_check
          %p470 = pneg %p189
        $region26: #{language_embedding_layer.1} parent=11 // pred_check_branch
          %472 = sbr.rel (%p470) target = $region28
        $region27: #{language_embedding_layer.1} parent=11 // pred_region
          _
        $region28: #{language_embedding_layer.1} parent=11 // pred_fallthru
          _
        // Predicated region
        $region29: #{language_embedding_layer.1} parent=11 // pred_check
          %p473 = pneg %p210
        $region30: #{language_embedding_layer.1} parent=11 // pred_check_branch
          %475 = sbr.rel (%p473) target = $region32
        $region31: #{language_embedding_layer.1} parent=11 // pred_region
          _
        $region32: #{language_embedding_layer.1} parent=11 // pred_fallthru
          _
        // Predicated region
        $region33: #{language_embedding_layer.1} parent=11 // pred_check
          %p476 = pneg %p231
        $region34: #{language_embedding_layer.1} parent=11 // pred_check_branch
          %478 = sbr.rel (%p476) target = $region36
        $region35: #{language_embedding_layer.1} parent=11 // pred_region
          _
        $region36: #{language_embedding_layer.1} parent=11 // pred_fallthru
          _
        // Predicated region
        $region37: #{language_embedding_layer.1} parent=11 // pred_check
          %p479 = pneg %p252
        $region38: #{language_embedding_layer.1} parent=11 // pred_check_branch
          %481 = sbr.rel (%p479) target = $region40
        $region39: #{language_embedding_layer.1} parent=11 // pred_region
          _
        $region40: #{language_embedding_layer.1} parent=11 // pred_fallthru
          _
        // Predicated region
        $region41: #{language_embedding_layer.1} parent=11 // pred_check
          %p482 = pneg %p273
        $region42: #{language_embedding_layer.1} parent=11 // pred_check_branch
          %484 = sbr.rel (%p482) target = $region44
        $region43: #{language_embedding_layer.1} parent=11 // pred_region
          _
        $region44: #{language_embedding_layer.1} parent=11 // pred_fallthru
          _
        // Predicated region
        $region45: #{language_embedding_layer.1} parent=11 // pred_check
          %p485 = pneg %p294
        $region46: #{language_embedding_layer.1} parent=11 // pred_check_branch
          %487 = sbr.rel (%p485) target = $region48
        $region47: #{language_embedding_layer.1} parent=11 // pred_region
          _
        $region48: #{language_embedding_layer.1} parent=11 // pred_fallthru
          _
        // Predicated region
        $region49: #{language_embedding_layer.1} parent=11 // pred_check
          %p488 = pneg %p315
        $region50: #{language_embedding_layer.1} parent=11 // pred_check_branch
          %490 = sbr.rel (%p488) target = $region52
        $region51: #{language_embedding_layer.1} parent=11 // pred_region
          _
        $region52: #{language_embedding_layer.1} parent=11 // pred_fallthru
          _
        // Predicated region
        $region53: #{language_embedding_layer.1} parent=11 // pred_check
          %p491 = pneg %p336
        $region54: #{language_embedding_layer.1} parent=11 // pred_check_branch
          %493 = sbr.rel (%p491) target = $region56
        $region55: #{language_embedding_layer.1} parent=11 // pred_region
          _
        $region56: #{language_embedding_layer.1} parent=11 // pred_fallthru
          _
        // Predicated region
        $region57: #{language_embedding_layer.1} parent=11 // pred_check
          %p494 = pneg %p357
        $region58: #{language_embedding_layer.1} parent=11 // pred_check_branch
          %496 = sbr.rel (%p494) target = $region60
        $region59: #{language_embedding_layer.1} parent=11 // pred_region
          _
        $region60: #{language_embedding_layer.1} parent=11 // pred_fallthru
          _
        // Predicated region
        $region61: #{language_embedding_layer.1} parent=11 // pred_check
          %p497 = pneg %p378
        $region62: #{language_embedding_layer.1} parent=11 // pred_check_branch
          %499 = sbr.rel (%p497) target = $region64
        $region63: #{language_embedding_layer.1} parent=11 // pred_region
          _
        $region64: #{language_embedding_layer.1} parent=11 // pred_fallthru
          _
        // Predicated region
        $region65: #{language_embedding_layer.1} parent=11 // pred_check
          %p500 = pneg %p399
        $region66: #{language_embedding_layer.1} parent=11 // pred_check_branch
          %502 = sbr.rel (%p500) target = $region68
        $region67: #{language_embedding_layer.1} parent=11 // pred_region
          _
        $region68: #{language_embedding_layer.1} parent=11 // pred_fallthru
          _
        // Predicated region
        $region69: #{language_embedding_layer.1} parent=11 // pred_check
          %p503 = pneg %p420
        $region70: #{language_embedding_layer.1} parent=11 // pred_check_branch
          %505 = sbr.rel (%p503) target = $region72
        $region71: #{language_embedding_layer.1} parent=11 // pred_region
          _
        $region72: #{language_embedding_layer.1} parent=11 // pred_fallthru
          _
      $region12: #{language_embedding_layer.1} parent=5 // pred_fallthru
        _
      %p506 = scmp.lt.s32.totalorder %s27, 2
      // Predicated region
      $region73: #{language_embedding_layer.1} parent=5 // pred_check
        %p507 = pneg %p506
      $region74: #{language_embedding_layer.1} parent=5 // pred_check_branch
        %509 = sbr.rel (%p507) target = $region76
      $region75: #{language_embedding_layer.1} parent=5 // pred_region
        // Predicated region
        $region77: #{language_embedding_layer.1} parent=75 // pred_check
          %p510 = pneg %p47
        $region78: #{language_embedding_layer.1} parent=75 // pred_check_branch
          %512 = sbr.rel (%p510) target = $region80
        $region79: #{language_embedding_layer.1} parent=75 // pred_region
          %p513 = scmp.lt.s32.totalorder %s27, 1
          %s514 = scalar_select %p513, %s27, 1
          %s515 = smul.addr %s514, 8
          %s516 = scalar_lea.vmem %s0, %s515
        $region80: #{language_embedding_layer.1} parent=75 // pred_fallthru
          _
        // Predicated region
        $region81: #{language_embedding_layer.1} parent=75 // pred_check
          %p517 = pneg %p94
        $region82: #{language_embedding_layer.1} parent=75 // pred_check_branch
          %519 = sbr.rel (%p517) target = $region84
        $region83: #{language_embedding_layer.1} parent=75 // pred_region
          %p520 = scmp.lt.s32.totalorder %s27, 1
          %s521 = scalar_select %p520, %s27, 1
          %s522 = smul.addr %s521, 8
          %s523 = scalar_lea.vmem %s2, %s522
        $region84: #{language_embedding_layer.1} parent=75 // pred_fallthru
          _
        // Predicated region
        $region85: #{language_embedding_layer.1} parent=75 // pred_check
          %p524 = pneg %p120
        $region86: #{language_embedding_layer.1} parent=75 // pred_check_branch
          %526 = sbr.rel (%p524) target = $region88
        $region87: #{language_embedding_layer.1} parent=75 // pred_region
          %p527 = scmp.lt.s32.totalorder %s27, 1
          %s528 = scalar_select %p527, %s27, 1
          %s529 = scalar_lea.vmem %s3, %s528
        $region88: #{language_embedding_layer.1} parent=75 // pred_fallthru
          _
      $region76: #{language_embedding_layer.1} parent=5 // pred_fallthru
        _
      %p530 = scmp.le.s32.totalorder 1, %s27
      %p531 = scmp.lt.s32.totalorder %s27, 3
      %p532 = pnand %p530, %p531
      %p533 = pneg %p532
      // Predicated region
      $region89: #{language_embedding_layer.1} parent=5 // pred_check
        _
      $region90: #{language_embedding_layer.1} parent=5 // pred_check_branch
        %535 = sbr.rel (%p532) target = $region92
      $region91: #{language_embedding_layer.1} parent=5 // pred_region
        %s536 = ssub.s32 %s27, 1
        %p537 = scmp.lt.s32.totalorder %s32, 1
        %s538 = scalar_select %p537, %s32, 1
        %s539 = smul.addr %s538, 8
        %s540 = scalar_lea.vmem %s0, %s539
        %p541 = pneg %p53
        %p542 = pneg %p50
        %p543 = pneg %p74
        %p544 = pneg %p71
        %p545 = scmp.lt.s32.totalorder %s32, 1
        %s546 = scalar_select %p545, %s32, 1
        %s547 = smul.addr %s546, 8
        %s548 = scalar_lea.vmem %s2, %s547
        %p549 = pneg %p100
        %p550 = pneg %p97
        %p551 = scmp.lt.s32.totalorder %s32, 1
        %s552 = scalar_select %p551, %s32, 1
        %s553 = scalar_lea.vmem %s3, %s552
        %p554 = pneg %p126
        %p555 = pneg %p123
        %p556 = pneg %p147
        %p557 = pneg %p144
        %p558 = pneg %p168
        %p559 = pneg %p165
        %p560 = pneg %p189
        %p561 = pneg %p186
        %p562 = pneg %p210
        %p563 = pneg %p207
        %p564 = pneg %p231
        %p565 = pneg %p228
        %p566 = pneg %p252
        %p567 = pneg %p249
        %p568 = pneg %p273
        %p569 = pneg %p270
        %p570 = pneg %p294
        %p571 = pneg %p291
        %p572 = pneg %p315
        %p573 = pneg %p312
        %p574 = pneg %p336
        %p575 = pneg %p333
        %p576 = pneg %p357
        %p577 = pneg %p354
        %p578 = pneg %p378
        %p579 = pneg %p375
        %p580 = pneg %p399
        %p581 = pneg %p396
        %p582 = pneg %p420
        %p583 = pneg %p417
        %p584 = pneg %p446
        %p585 = pneg %p443
        %s586 = sand.u32 %s433, 1
        %s587 = scalar_lea.sflag [#allocation3], %s586
        %s588 = sand.u32 %s433, 1
        %s589 = smul.addr %s588, 8
        %s590 = scalar_lea.vmem [#allocation2], %s589
        %p591 = scmp.lt.s32.totalorder %s32, 1
        %s592 = scalar_select %p591, %s32, 1
        %s593 = smul.addr %s592, 8
        %s594 = scalar_lea.vmem %s0, %s593
        %p595 = scmp.lt.s32.totalorder %s32, 1
        %s596 = scalar_select %p595, %s32, 1
        %s597 = smul.addr %s596, 8
        %s598 = scalar_lea.vmem %s2, %s597
        %p599 = scmp.lt.s32.totalorder %s32, 1
        %s600 = scalar_select %p599, %s32, 1
        %s601 = scalar_lea.vmem %s3, %s600
        %v603 = vld [vmem:[%s594] sm:$0xff]
        %v604 = vld [vmem:[%s1] sm:$0xff]
        %v605 = vadd.f32 %v603, %v604
        %v606 = vld [vmem:[%s598] sm:$0xff]
        %v607 = vadd.f32 %v605, %v606
        %v608 = vld [vmem:[%s4] sm:$0x1]
        %v609 = vld [vmem:[%s5] sm:$0x1]
        %vm610 = vcmask 261120
        %v611 = vsel %vm610, %v607, 0.0
        %612 = vadd.xlane.f32.xlu0 %v611
        %v613 = vpop.xlane.xlu0 %612
        %v614 = vrcp.pop 32.0
        %v615 = vmul.f32 %v613, %v614
        %v616 = vsub.f32 %v607, %v615
        %v617 = vmul.f32 %v616, %v616
        %v618 = vsel %vm610, %v617, 0.0
        %619 = vadd.xlane.f32.xlu0 %v618
        %v620 = vpop.xlane.xlu0 %619
        %v621 = vmul.f32 %v620, %v614
        %v622 = vadd.f32 %v621, 1e-12
        %v623 = vrsqrt.pop %v622
        %v624 = vmul.f32 %v616, %v623
        %v626 = vlaneseq
        %v627 = vshrl.u32 %v626, 7
        %v628 = vsub.s32 0, %v627
        %v629 = vrot.slane %v608, %v628
        %v631 = vmul.f32 %v624, %v629
        %v633 = vlaneseq
        %v634 = vshrl.u32 %v633, 7
        %v635 = vsub.s32 0, %v634
        %v636 = vrot.slane %v609, %v635
        %v638 = vadd.f32 %v631, %v636
        %v639 = vld [vmem:[%s601] sm:$0x1]
        %v640 = vsub.f32 1.0, %v639
        %v641 = vmul.f32 %v640, -10000.0
        %v642 = vpack.c.bf16 %v638, %v638
        %v643 = vld [vmem:[%s6] sm:$0xf]
        %v644 = vld [vmem:[%s6 + $0x4] sm:$0xf]
        %v645 = vld [vmem:[%s6 + $0x8] sm:$0xf]
        %v646 = vld [vmem:[%s6 + $0xc] sm:$0xf]
        %v647 = vld [vmem:[%s7] sm:$0x1]
        %v649 = vlaneseq
        %v650 = vshrl.u32 %v649, 7
        %v651 = vsub.s32 0, %v650
        %v652 = vrot.slane %v647, %v651
        %v658 = vunpack.c.l.b16 %v643
        %v659 = vunpack.c.l.b16 %v644
        %v660 = vunpack.c.l.b16 %v645
        %v661 = vunpack.c.l.b16 %v646
        %v662 = vpack.c.b16 %v659, %v658
        %v663 = vpack.c.b16 %v661, %v660
        %v667 = vsel %vm610, %v642, 0
        %669 = vmatprep.subr.bf16.mxu0 0
        %670 = vmatpush1.bf16.msra.mxu0 %v662
        %671 = vmatprep.subr.bf16.mxu0 0
        %672 = vmatpush1.bf16.msra.mxu0 %v663
        %673 = vmatprep.subr.bf16.mxu0 0
        %674 = vmatpush1.bf16.msra.mxu0 0
        %675 = vmatprep.subr.bf16.mxu0 0
        %676 = vmatpush1.bf16.msra.mxu0 0
        %677 = vmatprep.subr.bf16.mxu0 0
        %678 = vmatpush1.bf16.msra.mxu0 0
        %679 = vmatprep.subr.bf16.mxu0 0
        %680 = vmatpush1.bf16.msra.mxu0 0
        %681 = vmatprep.subr.bf16.mxu0 0
        %682 = vmatpush1.bf16.msra.mxu0 0
        %683 = vmatprep.subr.bf16.mxu0 0
        %684 = vmatpush1.bf16.msra.mxu0 0
        %685 = vmatprep.subr.bf16.mxu0 0
        %686 = vmatpush1.bf16.msra.mxu0 0
        %687 = vmatprep.subr.bf16.mxu0 0
        %688 = vmatpush1.bf16.msra.mxu0 0
        %689 = vmatprep.subr.bf16.mxu0 0
        %690 = vmatpush1.bf16.msra.mxu0 0
        %691 = vmatprep.subr.bf16.mxu0 0
        %692 = vmatpush1.bf16.msra.mxu0 0
        %693 = vmatprep.subr.bf16.mxu0 0
        %694 = vmatpush1.bf16.msra.mxu0 0
        %695 = vmatprep.subr.bf16.mxu0 0
        %696 = vmatpush1.bf16.msra.mxu0 0
        %697 = vmatprep.subr.bf16.mxu0 0
        %698 = vmatpush1.bf16.msra.mxu0 0
        %699 = vmatprep.subr.bf16.mxu0 0
        %700 = vmatpush1.bf16.msra.mxu0 0
        %701 = vmatprep.mubr.bf16.mxu0 0
        %702 = vmatmul.mubr.bf16.gmra.mrb[0].mxu0 %v667
        %v703 = vpop.f32.mrb[0].mxu0
        %v704 = vadd.f32 %v652, %v703
        %v705 = vpop.f32.mrb[0].mxu0
        %v706 = vpop.f32.mrb[0].mxu0
        %v707 = vpop.f32.mrb[0].mxu0
        %708 = vdwg.mxu0
        %v709 = vmul.f32 %v704, 0.25
        %711 = vrot.lane.b32.xlu0 %v709, 112
        %v712 = vpop.permute.xlu0 %711
        %v714 = vpack.c.bf16 %v709, %v709
        %v715 = vpack.c.bf16 %v712, %v712
        %717 = vrot.lane.b32.xlu0 %v704, 112
        %v718 = vpop.permute.xlu0 %717
        %v720 = vpack.c.bf16 %v704, %v704
        %v721 = vpack.c.bf16 %v718, %v718
        %v723 = vlaneseq
        %v724 = vshrl.u32 %v723, 7
        %v725 = vsub.s32 0, %v724
        %v726 = vrot.slane %v641, %v725
        %729 = vrot.lane.b32.xlu0 %v720, 96
        %v730 = vpop.permute.xlu0 %729
        %vm731 = vcmask 130048
        %v733 = vsel %vm731, %v714, 0
        %v736 = vsel %vm731, %v730, 0
        %738 = vmatprep.subr.bf16.mxu0 0
        %739 = vmatpush1.bf16.xpose.msra.mxu0 %v736
        %740 = vmatprep.subr.bf16.mxu0 0
        %741 = vmatpush1.bf16.xpose.msra.mxu0 0
        %742 = vmatprep.subr.bf16.mxu0 0
        %743 = vmatpush1.bf16.xpose.msra.mxu0 0
        %744 = vmatprep.subr.bf16.mxu0 0
        %745 = vmatpush1.bf16.xpose.msra.mxu0 0
        %746 = vmatprep.subr.bf16.mxu0 0
        %747 = vmatpush1.bf16.xpose.msra.mxu0 0
        %748 = vmatprep.subr.bf16.mxu0 0
        %749 = vmatpush1.bf16.xpose.msra.mxu0 0
        %750 = vmatprep.subr.bf16.mxu0 0
        %751 = vmatpush1.bf16.xpose.msra.mxu0 0
        %752 = vmatprep.subr.bf16.mxu0 0
        %753 = vmatpush1.bf16.xpose.msra.mxu0 0
        %754 = vmatprep.subr.bf16.mxu0 0
        %755 = vmatpush1.bf16.xpose.msra.mxu0 0
        %756 = vmatprep.subr.bf16.mxu0 0
        %757 = vmatpush1.bf16.xpose.msra.mxu0 0
        %758 = vmatprep.subr.bf16.mxu0 0
        %759 = vmatpush1.bf16.xpose.msra.mxu0 0
        %760 = vmatprep.subr.bf16.mxu0 0
        %761 = vmatpush1.bf16.xpose.msra.mxu0 0
        %762 = vmatprep.subr.bf16.mxu0 0
        %763 = vmatpush1.bf16.xpose.msra.mxu0 0
        %764 = vmatprep.subr.bf16.mxu0 0
        %765 = vmatpush1.bf16.xpose.msra.mxu0 0
        %766 = vmatprep.subr.bf16.mxu0 0
        %767 = vmatpush1.bf16.xpose.msra.mxu0 0
        %768 = vmatprep.subr.bf16.mxu0 0
        %769 = vmatpush1.bf16.xpose.msra.mxu0 0
        %770 = vmatprep.mubr.bf16.mxu0 0
        %771 = vmatmul.mubr.bf16.gmra.mrb[0].mxu0 %v733
        %v772 = vpop.f32.mrb[0].mxu0
        %v773 = vadd.f32 %v726, %v772
        %v774 = vpop.f32.mrb[0].mxu0
        %v775 = vpop.f32.mrb[0].mxu0
        %v776 = vpop.f32.mrb[0].mxu0
        %777 = vdwg.mxu0
        %779 = vrot.lane.b32.xlu0 %v721, 96
        %v780 = vpop.permute.xlu0 %779
        %v782 = vsel %vm731, %v715, 0
        %v785 = vsel %vm731, %v780, 0
        %787 = vmatprep.subr.bf16.mxu0 0
        %788 = vmatpush1.bf16.xpose.msra.mxu0 %v785
        %789 = vmatprep.subr.bf16.mxu0 0
        %790 = vmatpush1.bf16.xpose.msra.mxu0 0
        %791 = vmatprep.subr.bf16.mxu0 0
        %792 = vmatpush1.bf16.xpose.msra.mxu0 0
        %793 = vmatprep.subr.bf16.mxu0 0
        %794 = vmatpush1.bf16.xpose.msra.mxu0 0
        %795 = vmatprep.subr.bf16.mxu0 0
        %796 = vmatpush1.bf16.xpose.msra.mxu0 0
        %797 = vmatprep.subr.bf16.mxu0 0
        %798 = vmatpush1.bf16.xpose.msra.mxu0 0
        %799 = vmatprep.subr.bf16.mxu0 0
        %800 = vmatpush1.bf16.xpose.msra.mxu0 0
        %801 = vmatprep.subr.bf16.mxu0 0
        %802 = vmatpush1.bf16.xpose.msra.mxu0 0
        %803 = vmatprep.subr.bf16.mxu0 0
        %804 = vmatpush1.bf16.xpose.msra.mxu0 0
        %805 = vmatprep.subr.bf16.mxu0 0
        %806 = vmatpush1.bf16.xpose.msra.mxu0 0
        %807 = vmatprep.subr.bf16.mxu0 0
        %808 = vmatpush1.bf16.xpose.msra.mxu0 0
        %809 = vmatprep.subr.bf16.mxu0 0
        %810 = vmatpush1.bf16.xpose.msra.mxu0 0
        %811 = vmatprep.subr.bf16.mxu0 0
        %812 = vmatpush1.bf16.xpose.msra.mxu0 0
        %813 = vmatprep.subr.bf16.mxu0 0
        %814 = vmatpush1.bf16.xpose.msra.mxu0 0
        %815 = vmatprep.subr.bf16.mxu0 0
        %816 = vmatpush1.bf16.xpose.msra.mxu0 0
        %817 = vmatprep.subr.bf16.mxu0 0
        %818 = vmatpush1.bf16.xpose.msra.mxu0 0
        %819 = vmatprep.mubr.bf16.mxu0 0
        %820 = vmatmul.mubr.bf16.gmra.mrb[0].mxu0 %v782
        %v821 = vpop.f32.mrb[0].mxu0
        %v822 = vadd.f32 %v726, %v821
        %v823 = vpop.f32.mrb[0].mxu0
        %v824 = vpop.f32.mrb[0].mxu0
        %v825 = vpop.f32.mrb[0].mxu0
        %826 = vdwg.mxu0
        %vm827 = vcmask 64512
        %v828 = vsel %vm827, %v773, -inf
        %829 = vmax.xlane.f32.xlu0 %v828
        %v830 = vpop.xlane.xlu0 %829
        %v831 = vsel %vm827, %v822, -inf
        %832 = vmax.xlane.f32.xlu0 %v831
        %v833 = vpop.xlane.xlu0 %832
        %v834 = vsub.f32 %v773, %v830
        %v835 = vsub.f32 %v822, %v833
        %v836 = vmul.f32 %v834, 1.442695
        %v837 = vpow.pop %v836
        %v838 = vmul.f32 %v835, 1.442695
        %v839 = vpow.pop %v838
        %v840 = vsel %vm827, %v837, 0.0
        %841 = vadd.xlane.f32.xlu0 %v840
        %v842 = vpop.xlane.xlu0 %841
        %v843 = vsel %vm827, %v839, 0.0
        %844 = vadd.xlane.f32.xlu0 %v843
        %v845 = vpop.xlane.xlu0 %844
        %v846 = vrcp.pop %v842
        %v847 = vrcp.pop %v845
        %v848 = vmul.f32 %v837, %v846
        %v849 = vmul.f32 %v839, %v847
        %v850 = vpack.c.bf16 %v848, %v848
        %v851 = vpack.c.bf16 %v849, %v849
        %852 = vrot.lane.b32.xlu0 %v720, 64
        %v853 = vpop.permute.xlu0 %852
        %v855 = vsel %vm827, %v850, 0
        %vm857 = vcmask 1043456
        %v859 = vsel %vm857, %v853, 0
        %861 = vmatprep.subr.bf16.mxu0 0
        %862 = vmatpush1.bf16.msra.mxu0 %v859
        %863 = vmatprep.subr.bf16.mxu0 0
        %864 = vmatpush1.bf16.msra.mxu0 0
        %865 = vmatprep.subr.bf16.mxu0 0
        %866 = vmatpush1.bf16.msra.mxu0 0
        %867 = vmatprep.subr.bf16.mxu0 0
        %868 = vmatpush1.bf16.msra.mxu0 0
        %869 = vmatprep.subr.bf16.mxu0 0
        %870 = vmatpush1.bf16.msra.mxu0 0
        %871 = vmatprep.subr.bf16.mxu0 0
        %872 = vmatpush1.bf16.msra.mxu0 0
        %873 = vmatprep.subr.bf16.mxu0 0
        %874 = vmatpush1.bf16.msra.mxu0 0
        %875 = vmatprep.subr.bf16.mxu0 0
        %876 = vmatpush1.bf16.msra.mxu0 0
        %877 = vmatprep.subr.bf16.mxu0 0
        %878 = vmatpush1.bf16.msra.mxu0 0
        %879 = vmatprep.subr.bf16.mxu0 0
        %880 = vmatpush1.bf16.msra.mxu0 0
        %881 = vmatprep.subr.bf16.mxu0 0
        %882 = vmatpush1.bf16.msra.mxu0 0
        %883 = vmatprep.subr.bf16.mxu0 0
        %884 = vmatpush1.bf16.msra.mxu0 0
        %885 = vmatprep.subr.bf16.mxu0 0
        %886 = vmatpush1.bf16.msra.mxu0 0
        %887 = vmatprep.subr.bf16.mxu0 0
        %888 = vmatpush1.bf16.msra.mxu0 0
        %889 = vmatprep.subr.bf16.mxu0 0
        %890 = vmatpush1.bf16.msra.mxu0 0
        %891 = vmatprep.subr.bf16.mxu0 0
        %892 = vmatpush1.bf16.msra.mxu0 0
        %893 = vmatprep.mubr.bf16.mxu0 0
        %894 = vmatmul.mubr.bf16.gmra.mrb[0].mxu0 %v855
        %v895 = vpop.f32.mrb[0].mxu0
        %v896 = vadd.f32 0.0, %v895
        %v897 = vpop.f32.mrb[0].mxu0
        %v898 = vpop.f32.mrb[0].mxu0
        %v899 = vpop.f32.mrb[0].mxu0
        %900 = vdwg.mxu0
        %901 = vrot.lane.b32.xlu0 %v721, 64
        %v902 = vpop.permute.xlu0 %901
        %v904 = vsel %vm827, %v851, 0
        %v907 = vsel %vm857, %v902, 0
        %909 = vmatprep.subr.bf16.mxu0 0
        %910 = vmatpush1.bf16.msra.mxu0 %v907
        %911 = vmatprep.subr.bf16.mxu0 0
        %912 = vmatpush1.bf16.msra.mxu0 0
        %913 = vmatprep.subr.bf16.mxu0 0
        %914 = vmatpush1.bf16.msra.mxu0 0
        %915 = vmatprep.subr.bf16.mxu0 0
        %916 = vmatpush1.bf16.msra.mxu0 0
        %917 = vmatprep.subr.bf16.mxu0 0
        %918 = vmatpush1.bf16.msra.mxu0 0
        %919 = vmatprep.subr.bf16.mxu0 0
        %920 = vmatpush1.bf16.msra.mxu0 0
        %921 = vmatprep.subr.bf16.mxu0 0
        %922 = vmatpush1.bf16.msra.mxu0 0
        %923 = vmatprep.subr.bf16.mxu0 0
        %924 = vmatpush1.bf16.msra.mxu0 0
        %925 = vmatprep.subr.bf16.mxu0 0
        %926 = vmatpush1.bf16.msra.mxu0 0
        %927 = vmatprep.subr.bf16.mxu0 0
        %928 = vmatpush1.bf16.msra.mxu0 0
        %929 = vmatprep.subr.bf16.mxu0 0
        %930 = vmatpush1.bf16.msra.mxu0 0
        %931 = vmatprep.subr.bf16.mxu0 0
        %932 = vmatpush1.bf16.msra.mxu0 0
        %933 = vmatprep.subr.bf16.mxu0 0
        %934 = vmatpush1.bf16.msra.mxu0 0
        %935 = vmatprep.subr.bf16.mxu0 0
        %936 = vmatpush1.bf16.msra.mxu0 0
        %937 = vmatprep.subr.bf16.mxu0 0
        %938 = vmatpush1.bf16.msra.mxu0 0
        %939 = vmatprep.subr.bf16.mxu0 0
        %940 = vmatpush1.bf16.msra.mxu0 0
        %941 = vmatprep.mubr.bf16.mxu0 0
        %942 = vmatmul.mubr.bf16.gmra.mrb[0].mxu0 %v904
        %v943 = vpop.f32.mrb[0].mxu0
        %v944 = vadd.f32 0.0, %v943
        %v945 = vpop.f32.mrb[0].mxu0
        %v946 = vpop.f32.mrb[0].mxu0
        %v947 = vpop.f32.mrb[0].mxu0
        %948 = vdwg.mxu0
        %950 = vrot.lane.b32.xlu0 %v944, 16
        %v951 = vpop.permute.xlu0 %950
        %v953 = vsel %vm731, %v896, %v951
        %v954 = vpack.c.bf16 %v953, %v953
        %v955 = vld [vmem:[%s8] sm:$0xf]
        %v956 = vld [vmem:[%s8 + $0x4] sm:$0xf]
        %v957 = vld [vmem:[%s8 + $0x8] sm:$0xf]
        %v958 = vld [vmem:[%s8 + $0xc] sm:$0xf]
        %v959 = vld [vmem:[%s9] sm:$0x1]
        %v961 = vlaneseq
        %v962 = vshrl.u32 %v961, 7
        %v963 = vsub.s32 0, %v962
        %v964 = vrot.slane %v959, %v963
        %v970 = vunpack.c.l.b16 %v955
        %v971 = vunpack.c.l.b16 %v956
        %v972 = vunpack.c.l.b16 %v957
        %v973 = vunpack.c.l.b16 %v958
        %v974 = vpack.c.b16 %v971, %v970
        %v975 = vpack.c.b16 %v973, %v972
        %v979 = vsel %vm610, %v954, 0
        %981 = vmatprep.subr.bf16.mxu0 0
        %982 = vmatpush1.bf16.msra.mxu0 %v974
        %983 = vmatprep.subr.bf16.mxu0 0
        %984 = vmatpush1.bf16.msra.mxu0 %v975
        %985 = vmatprep.subr.bf16.mxu0 0
        %986 = vmatpush1.bf16.msra.mxu0 0
        %987 = vmatprep.subr.bf16.mxu0 0
        %988 = vmatpush1.bf16.msra.mxu0 0
        %989 = vmatprep.subr.bf16.mxu0 0
        %990 = vmatpush1.bf16.msra.mxu0 0
        %991 = vmatprep.subr.bf16.mxu0 0
        %992 = vmatpush1.bf16.msra.mxu0 0
        %993 = vmatprep.subr.bf16.mxu0 0
        %994 = vmatpush1.bf16.msra.mxu0 0
        %995 = vmatprep.subr.bf16.mxu0 0
        %996 = vmatpush1.bf16.msra.mxu0 0
        %997 = vmatprep.subr.bf16.mxu0 0
        %998 = vmatpush1.bf16.msra.mxu0 0
        %999 = vmatprep.subr.bf16.mxu0 0
        %1000 = vmatpush1.bf16.msra.mxu0 0
        %1001 = vmatprep.subr.bf16.mxu0 0
        %1002 = vmatpush1.bf16.msra.mxu0 0
        %1003 = vmatprep.subr.bf16.mxu0 0
        %1004 = vmatpush1.bf16.msra.mxu0 0
        %1005 = vmatprep.subr.bf16.mxu0 0
        %1006 = vmatpush1.bf16.msra.mxu0 0
        %1007 = vmatprep.subr.bf16.mxu0 0
        %1008 = vmatpush1.bf16.msra.mxu0 0
        %1009 = vmatprep.subr.bf16.mxu0 0
        %1010 = vmatpush1.bf16.msra.mxu0 0
        %1011 = vmatprep.subr.bf16.mxu0 0
        %1012 = vmatpush1.bf16.msra.mxu0 0
        %1013 = vmatprep.mubr.bf16.mxu0 0
        %1014 = vmatmul.mubr.bf16.gmra.mrb[0].mxu0 %v979
        %v1015 = vpop.f32.mrb[0].mxu0
        %v1016 = vadd.f32 %v964, %v1015
        %v1017 = vpop.f32.mrb[0].mxu0
        %v1018 = vpop.f32.mrb[0].mxu0
        %v1019 = vpop.f32.mrb[0].mxu0
        %1020 = vdwg.mxu0
        %v1021 = vadd.f32 %v638, %v1016
        %v1022 = vld [vmem:[%s10] sm:$0x1]
        %v1023 = vld [vmem:[%s11] sm:$0x1]
        %v1024 = vsel %vm610, %v1021, 0.0
        %1025 = vadd.xlane.f32.xlu0 %v1024
        %v1026 = vpop.xlane.xlu0 %1025
        %v1027 = vmul.f32 %v1026, %v614
        %v1028 = vsub.f32 %v1021, %v1027
        %v1029 = vmul.f32 %v1028, %v1028
        %v1030 = vsel %vm610, %v1029, 0.0
        %1031 = vadd.xlane.f32.xlu0 %v1030
        %v1032 = vpop.xlane.xlu0 %1031
        %v1033 = vmul.f32 %v1032, %v614
        %v1034 = vadd.f32 %v1033, 1e-12
        %v1035 = vrsqrt.pop %v1034
        %v1036 = vmul.f32 %v1028, %v1035
        %v1038 = vlaneseq
        %v1039 = vshrl.u32 %v1038, 7
        %v1040 = vsub.s32 0, %v1039
        %v1041 = vrot.slane %v1022, %v1040
        %v1043 = vmul.f32 %v1036, %v1041
        %v1045 = vlaneseq
        %v1046 = vshrl.u32 %v1045, 7
        %v1047 = vsub.s32 0, %v1046
        %v1048 = vrot.slane %v1023, %v1047
        %v1050 = vadd.f32 %v1043, %v1048
        %v1051 = vpack.c.bf16 %v1050, %v1050
        %v1052 = vld [vmem:[%s12] sm:$0xf]
        %v1053 = vld [vmem:[%s12 + $0x4] sm:$0xf]
        %v1054 = vld [vmem:[%s12 + $0x8] sm:$0xf]
        %v1055 = vld [vmem:[%s12 + $0xc] sm:$0xf]
        %v1056 = vld [vmem:[%s13] sm:$0x1]
        %v1058 = vlaneseq
        %v1059 = vshrl.u32 %v1058, 7
        %v1060 = vsub.s32 0, %v1059
        %v1061 = vrot.slane %v1056, %v1060
        %v1067 = vunpack.c.l.b16 %v1052
        %v1068 = vunpack.c.l.b16 %v1053
        %v1069 = vunpack.c.l.b16 %v1054
        %v1070 = vunpack.c.l.b16 %v1055
        %v1071 = vpack.c.b16 %v1068, %v1067
        %v1072 = vpack.c.b16 %v1070, %v1069
        %v1076 = vsel %vm610, %v1051, 0
        %1078 = vmatprep.subr.bf16.mxu0 0
        %1079 = vmatpush1.bf16.msra.mxu0 %v1071
        %1080 = vmatprep.subr.bf16.mxu0 0
        %1081 = vmatpush1.bf16.msra.mxu0 %v1072
        %1082 = vmatprep.subr.bf16.mxu0 0
        %1083 = vmatpush1.bf16.msra.mxu0 0
        %1084 = vmatprep.subr.bf16.mxu0 0
        %1085 = vmatpush1.bf16.msra.mxu0 0
        %1086 = vmatprep.subr.bf16.mxu0 0
        %1087 = vmatpush1.bf16.msra.mxu0 0
        %1088 = vmatprep.subr.bf16.mxu0 0
        %1089 = vmatpush1.bf16.msra.mxu0 0
        %1090 = vmatprep.subr.bf16.mxu0 0
        %1091 = vmatpush1.bf16.msra.mxu0 0
        %1092 = vmatprep.subr.bf16.mxu0 0
        %1093 = vmatpush1.bf16.msra.mxu0 0
        %1094 = vmatprep.subr.bf16.mxu0 0
        %1095 = vmatpush1.bf16.msra.mxu0 0
        %1096 = vmatprep.subr.bf16.mxu0 0
        %1097 = vmatpush1.bf16.msra.mxu0 0
        %1098 = vmatprep.subr.bf16.mxu0 0
        %1099 = vmatpush1.bf16.msra.mxu0 0
        %1100 = vmatprep.subr.bf16.mxu0 0
        %1101 = vmatpush1.bf16.msra.mxu0 0
        %1102 = vmatprep.subr.bf16.mxu0 0
        %1103 = vmatpush1.bf16.msra.mxu0 0
        %1104 = vmatprep.subr.bf16.mxu0 0
        %1105 = vmatpush1.bf16.msra.mxu0 0
        %1106 = vmatprep.subr.bf16.mxu0 0
        %1107 = vmatpush1.bf16.msra.mxu0 0
        %1108 = vmatprep.subr.bf16.mxu0 0
        %1109 = vmatpush1.bf16.msra.mxu0 0
        %1110 = vmatprep.mubr.bf16.mxu0 0
        %1111 = vmatmul.mubr.bf16.gmra.mrb[0].mxu0 %v1076
        %v1112 = vpop.f32.mrb[0].mxu0
        %v1113 = vadd.f32 %v1061, %v1112
        %v1114 = vpop.f32.mrb[0].mxu0
        %v1115 = vpop.f32.mrb[0].mxu0
        %v1116 = vpop.f32.mrb[0].mxu0
        %1117 = vdwg.mxu0
        %v1118 = vmul.f32 %v1113, %v1113
        %v1119 = vmul.f32 %v1113, %v1118
        %v1120 = vmul.f32 %v1119, 0.044715
        %v1121 = vadd.f32 %v1113, %v1120
        %v1122 = vmul.f32 %v1121, 0.7978846
        %v1123 = vtanh.pop %v1122
        %v1124 = vadd.f32 %v1123, 1.0
        %v1125 = vmul.f32 %v1124, 0.5
        %v1126 = vmul.f32 %v1113, %v1125
        %v1127 = vpack.c.bf16 %v1126, %v1126
        %v1128 = vld [vmem:[%s14] sm:$0xf]
        %v1129 = vld [vmem:[%s14 + $0x4] sm:$0xf]
        %v1130 = vld [vmem:[%s14 + $0x8] sm:$0xf]
        %v1131 = vld [vmem:[%s14 + $0xc] sm:$0xf]
        %v1132 = vld [vmem:[%s14 + $0x10] sm:$0xf]
        %v1133 = vld [vmem:[%s14 + $0x14] sm:$0xf]
        %v1134 = vld [vmem:[%s14 + $0x18] sm:$0xf]
        %v1135 = vld [vmem:[%s14 + $0x1c] sm:$0xf]
        %v1136 = vld [vmem:[%s15] sm:$0x1]
        %v1138 = vlaneseq
        %v1139 = vshrl.u32 %v1138, 7
        %v1140 = vsub.s32 0, %v1139
        %v1141 = vrot.slane %v1136, %v1140
        %v1151 = vunpack.c.l.b16 %v1128
        %v1152 = vunpack.c.l.b16 %v1129
        %v1153 = vunpack.c.l.b16 %v1130
        %v1154 = vunpack.c.l.b16 %v1131
        %v1155 = vunpack.c.l.b16 %v1132
        %v1156 = vunpack.c.l.b16 %v1133
        %v1157 = vunpack.c.l.b16 %v1134
        %v1158 = vunpack.c.l.b16 %v1135
        %v1159 = vpack.c.b16 %v1152, %v1151
        %v1160 = vpack.c.b16 %v1154, %v1153
        %v1161 = vpack.c.b16 %v1156, %v1155
        %v1162 = vpack.c.b16 %v1158, %v1157
        %vm1167 = vcmask 523264
        %v1169 = vsel %vm1167, %v1127, 0
        %1171 = vmatprep.subr.bf16.mxu0 0
        %1172 = vmatpush1.bf16.msra.mxu0 %v1159
        %1173 = vmatprep.subr.bf16.mxu0 0
        %1174 = vmatpush1.bf16.msra.mxu0 %v1160
        %1175 = vmatprep.subr.bf16.mxu0 0
        %1176 = vmatpush1.bf16.msra.mxu0 %v1161
        %1177 = vmatprep.subr.bf16.mxu0 0
        %1178 = vmatpush1.bf16.msra.mxu0 %v1162
        %1179 = vmatprep.subr.bf16.mxu0 0
        %1180 = vmatpush1.bf16.msra.mxu0 0
        %1181 = vmatprep.subr.bf16.mxu0 0
        %1182 = vmatpush1.bf16.msra.mxu0 0
        %1183 = vmatprep.subr.bf16.mxu0 0
        %1184 = vmatpush1.bf16.msra.mxu0 0
        %1185 = vmatprep.subr.bf16.mxu0 0
        %1186 = vmatpush1.bf16.msra.mxu0 0
        %1187 = vmatprep.subr.bf16.mxu0 0
        %1188 = vmatpush1.bf16.msra.mxu0 0
        %1189 = vmatprep.subr.bf16.mxu0 0
        %1190 = vmatpush1.bf16.msra.mxu0 0
        %1191 = vmatprep.subr.bf16.mxu0 0
        %1192 = vmatpush1.bf16.msra.mxu0 0
        %1193 = vmatprep.subr.bf16.mxu0 0
        %1194 = vmatpush1.bf16.msra.mxu0 0
        %1195 = vmatprep.subr.bf16.mxu0 0
        %1196 = vmatpush1.bf16.msra.mxu0 0
        %1197 = vmatprep.subr.bf16.mxu0 0
        %1198 = vmatpush1.bf16.msra.mxu0 0
        %1199 = vmatprep.subr.bf16.mxu0 0
        %1200 = vmatpush1.bf16.msra.mxu0 0
        %1201 = vmatprep.subr.bf16.mxu0 0
        %1202 = vmatpush1.bf16.msra.mxu0 0
        %1203 = vmatprep.mubr.bf16.mxu0 0
        %1204 = vmatmul.mubr.bf16.gmra.mrb[0].mxu0 %v1169
        %v1205 = vpop.f32.mrb[0].mxu0
        %v1206 = vadd.f32 %v1141, %v1205
        %v1207 = vpop.f32.mrb[0].mxu0
        %v1208 = vpop.f32.mrb[0].mxu0
        %v1209 = vpop.f32.mrb[0].mxu0
        %1210 = vdwg.mxu0
        %v1211 = vadd.f32 %v1050, %v1206
        %v1212 = vld [vmem:[%s16] sm:$0x1]
        %v1213 = vld [vmem:[%s17] sm:$0x1]
        %v1214 = vsel %vm610, %v1211, 0.0
        %1215 = vadd.xlane.f32.xlu0 %v1214
        %v1216 = vpop.xlane.xlu0 %1215
        %v1217 = vmul.f32 %v1216, %v614
        %v1218 = vsub.f32 %v1211, %v1217
        %v1219 = vmul.f32 %v1218, %v1218
        %v1220 = vsel %vm610, %v1219, 0.0
        %1221 = vadd.xlane.f32.xlu0 %v1220
        %v1222 = vpop.xlane.xlu0 %1221
        %v1223 = vmul.f32 %v1222, %v614
        %v1224 = vadd.f32 %v1223, 1e-12
        %v1225 = vrsqrt.pop %v1224
        %v1226 = vmul.f32 %v1218, %v1225
        %v1228 = vlaneseq
        %v1229 = vshrl.u32 %v1228, 7
        %v1230 = vsub.s32 0, %v1229
        %v1231 = vrot.slane %v1212, %v1230
        %v1233 = vmul.f32 %v1226, %v1231
        %v1235 = vlaneseq
        %v1236 = vshrl.u32 %v1235, 7
        %v1237 = vsub.s32 0, %v1236
        %v1238 = vrot.slane %v1213, %v1237
        %v1240 = vadd.f32 %v1233, %v1238
        %v1241 = vpack.c.bf16 %v1240, %v1240
        %s1242 = scalar_lea.vmem %s6, 16
        %v1243 = vld [vmem:[%s1242] sm:$0xf]
        %v1244 = vld [vmem:[%s1242 + $0x4] sm:$0xf]
        %v1245 = vld [vmem:[%s1242 + $0x8] sm:$0xf]
        %v1246 = vld [vmem:[%s1242 + $0xc] sm:$0xf]
        %s1247 = scalar_lea.vmem %s7, 1
        %v1248 = vld [vmem:[%s1247] sm:$0x1]
        %v1250 = vlaneseq
        %v1251 = vshrl.u32 %v1250, 7
        %v1252 = vsub.s32 0, %v1251
        %v1253 = vrot.slane %v1248, %v1252
        %v1259 = vunpack.c.l.b16 %v1243
        %v1260 = vunpack.c.l.b16 %v1244
        %v1261 = vunpack.c.l.b16 %v1245
        %v1262 = vunpack.c.l.b16 %v1246
        %v1263 = vpack.c.b16 %v1260, %v1259
        %v1264 = vpack.c.b16 %v1262, %v1261
        %v1268 = vsel %vm610, %v1241, 0
        %1270 = vmatprep.subr.bf16.mxu0 0
        %1271 = vmatpush1.bf16.msra.mxu0 %v1263
        %1272 = vmatprep.subr.bf16.mxu0 0
        %1273 = vmatpush1.bf16.msra.mxu0 %v1264
        %1274 = vmatprep.subr.bf16.mxu0 0
        %1275 = vmatpush1.bf16.msra.mxu0 0
        %1276 = vmatprep.subr.bf16.mxu0 0
        %1277 = vmatpush1.bf16.msra.mxu0 0
        %1278 = vmatprep.subr.bf16.mxu0 0
        %1279 = vmatpush1.bf16.msra.mxu0 0
        %1280 = vmatprep.subr.bf16.mxu0 0
        %1281 = vmatpush1.bf16.msra.mxu0 0
        %1282 = vmatprep.subr.bf16.mxu0 0
        %1283 = vmatpush1.bf16.msra.mxu0 0
        %1284 = vmatprep.subr.bf16.mxu0 0
        %1285 = vmatpush1.bf16.msra.mxu0 0
        %1286 = vmatprep.subr.bf16.mxu0 0
        %1287 = vmatpush1.bf16.msra.mxu0 0
        %1288 = vmatprep.subr.bf16.mxu0 0
        %1289 = vmatpush1.bf16.msra.mxu0 0
        %1290 = vmatprep.subr.bf16.mxu0 0
        %1291 = vmatpush1.bf16.msra.mxu0 0
        %1292 = vmatprep.subr.bf16.mxu0 0
        %1293 = vmatpush1.bf16.msra.mxu0 0
        %1294 = vmatprep.subr.bf16.mxu0 0
        %1295 = vmatpush1.bf16.msra.mxu0 0
        %1296 = vmatprep.subr.bf16.mxu0 0
        %1297 = vmatpush1.bf16.msra.mxu0 0
        %1298 = vmatprep.subr.bf16.mxu0 0
        %1299 = vmatpush1.bf16.msra.mxu0 0
        %1300 = vmatprep.subr.bf16.mxu0 0
        %1301 = vmatpush1.bf16.msra.mxu0 0
        %1302 = vmatprep.mubr.bf16.mxu0 0
        %1303 = vmatmul.mubr.bf16.gmra.mrb[0].mxu0 %v1268
        %v1304 = vpop.f32.mrb[0].mxu0
        %v1305 = vadd.f32 %v1253, %v1304
        %v1306 = vpop.f32.mrb[0].mxu0
        %v1307 = vpop.f32.mrb[0].mxu0
        %v1308 = vpop.f32.mrb[0].mxu0
        %1309 = vdwg.mxu0
        %v1310 = vmul.f32 %v1305, 0.25
        %1312 = vrot.lane.b32.xlu0 %v1310, 112
        %v1313 = vpop.permute.xlu0 %1312
        %v1315 = vpack.c.bf16 %v1310, %v1310
        %v1316 = vpack.c.bf16 %v1313, %v1313
        %1318 = vrot.lane.b32.xlu0 %v1305, 112
        %v1319 = vpop.permute.xlu0 %1318
        %v1321 = vpack.c.bf16 %v1305, %v1305
        %v1322 = vpack.c.bf16 %v1319, %v1319
        %1324 = vrot.lane.b32.xlu0 %v1321, 96
        %v1325 = vpop.permute.xlu0 %1324
        %v1327 = vsel %vm731, %v1315, 0
        %v1330 = vsel %vm731, %v1325, 0
        %1332 = vmatprep.subr.bf16.mxu0 0
        %1333 = vmatpush1.bf16.xpose.msra.mxu0 %v1330
        %1334 = vmatprep.subr.bf16.mxu0 0
        %1335 = vmatpush1.bf16.xpose.msra.mxu0 0
        %1336 = vmatprep.subr.bf16.mxu0 0
        %1337 = vmatpush1.bf16.xpose.msra.mxu0 0
        %1338 = vmatprep.subr.bf16.mxu0 0
        %1339 = vmatpush1.bf16.xpose.msra.mxu0 0
        %1340 = vmatprep.subr.bf16.mxu0 0
        %1341 = vmatpush1.bf16.xpose.msra.mxu0 0
        %1342 = vmatprep.subr.bf16.mxu0 0
        %1343 = vmatpush1.bf16.xpose.msra.mxu0 0
        %1344 = vmatprep.subr.bf16.mxu0 0
        %1345 = vmatpush1.bf16.xpose.msra.mxu0 0
        %1346 = vmatprep.subr.bf16.mxu0 0
        %1347 = vmatpush1.bf16.xpose.msra.mxu0 0
        %1348 = vmatprep.subr.bf16.mxu0 0
        %1349 = vmatpush1.bf16.xpose.msra.mxu0 0
        %1350 = vmatprep.subr.bf16.mxu0 0
        %1351 = vmatpush1.bf16.xpose.msra.mxu0 0
        %1352 = vmatprep.subr.bf16.mxu0 0
        %1353 = vmatpush1.bf16.xpose.msra.mxu0 0
        %1354 = vmatprep.subr.bf16.mxu0 0
        %1355 = vmatpush1.bf16.xpose.msra.mxu0 0
        %1356 = vmatprep.subr.bf16.mxu0 0
        %1357 = vmatpush1.bf16.xpose.msra.mxu0 0
        %1358 = vmatprep.subr.bf16.mxu0 0
        %1359 = vmatpush1.bf16.xpose.msra.mxu0 0
        %1360 = vmatprep.subr.bf16.mxu0 0
        %1361 = vmatpush1.bf16.xpose.msra.mxu0 0
        %1362 = vmatprep.subr.bf16.mxu0 0
        %1363 = vmatpush1.bf16.xpose.msra.mxu0 0
        %1364 = vmatprep.mubr.bf16.mxu0 0
        %1365 = vmatmul.mubr.bf16.gmra.mrb[0].mxu0 %v1327
        %v1366 = vpop.f32.mrb[0].mxu0
        %v1367 = vadd.f32 %v726, %v1366
        %v1368 = vpop.f32.mrb[0].mxu0
        %v1369 = vpop.f32.mrb[0].mxu0
        %v1370 = vpop.f32.mrb[0].mxu0
        %1371 = vdwg.mxu0
        %1373 = vrot.lane.b32.xlu0 %v1322, 96
        %v1374 = vpop.permute.xlu0 %1373
        %v1376 = vsel %vm731, %v1316, 0
        %v1379 = vsel %vm731, %v1374, 0
        %1381 = vmatprep.subr.bf16.mxu0 0
        %1382 = vmatpush1.bf16.xpose.msra.mxu0 %v1379
        %1383 = vmatprep.subr.bf16.mxu0 0
        %1384 = vmatpush1.bf16.xpose.msra.mxu0 0
        %1385 = vmatprep.subr.bf16.mxu0 0
        %1386 = vmatpush1.bf16.xpose.msra.mxu0 0
        %1387 = vmatprep.subr.bf16.mxu0 0
        %1388 = vmatpush1.bf16.xpose.msra.mxu0 0
        %1389 = vmatprep.subr.bf16.mxu0 0
        %1390 = vmatpush1.bf16.xpose.msra.mxu0 0
        %1391 = vmatprep.subr.bf16.mxu0 0
        %1392 = vmatpush1.bf16.xpose.msra.mxu0 0
        %1393 = vmatprep.subr.bf16.mxu0 0
        %1394 = vmatpush1.bf16.xpose.msra.mxu0 0
        %1395 = vmatprep.subr.bf16.mxu0 0
        %1396 = vmatpush1.bf16.xpose.msra.mxu0 0
        %1397 = vmatprep.subr.bf16.mxu0 0
        %1398 = vmatpush1.bf16.xpose.msra.mxu0 0
        %1399 = vmatprep.subr.bf16.mxu0 0
        %1400 = vmatpush1.bf16.xpose.msra.mxu0 0
        %1401 = vmatprep.subr.bf16.mxu0 0
        %1402 = vmatpush1.bf16.xpose.msra.mxu0 0
        %1403 = vmatprep.subr.bf16.mxu0 0
        %1404 = vmatpush1.bf16.xpose.msra.mxu0 0
        %1405 = vmatprep.subr.bf16.mxu0 0
        %1406 = vmatpush1.bf16.xpose.msra.mxu0 0
        %1407 = vmatprep.subr.bf16.mxu0 0
        %1408 = vmatpush1.bf16.xpose.msra.mxu0 0
        %1409 = vmatprep.subr.bf16.mxu0 0
        %1410 = vmatpush1.bf16.xpose.msra.mxu0 0
        %1411 = vmatprep.subr.bf16.mxu0 0
        %1412 = vmatpush1.bf16.xpose.msra.mxu0 0
        %1413 = vmatprep.mubr.bf16.mxu0 0
        %1414 = vmatmul.mubr.bf16.gmra.mrb[0].mxu0 %v1376
        %v1415 = vpop.f32.mrb[0].mxu0
        %v1416 = vadd.f32 %v726, %v1415
        %v1417 = vpop.f32.mrb[0].mxu0
        %v1418 = vpop.f32.mrb[0].mxu0
        %v1419 = vpop.f32.mrb[0].mxu0
        %1420 = vdwg.mxu0
        %v1421 = vsel %vm827, %v1367, -inf
        %1422 = vmax.xlane.f32.xlu0 %v1421
        %v1423 = vpop.xlane.xlu0 %1422
        %v1424 = vsel %vm827, %v1416, -inf
        %1425 = vmax.xlane.f32.xlu0 %v1424
        %v1426 = vpop.xlane.xlu0 %1425
        %v1427 = vsub.f32 %v1367, %v1423
        %v1428 = vsub.f32 %v1416, %v1426
        %v1429 = vmul.f32 %v1427, 1.442695
        %v1430 = vpow.pop %v1429
        %v1431 = vmul.f32 %v1428, 1.442695
        %v1432 = vpow.pop %v1431
        %v1433 = vsel %vm827, %v1430, 0.0
        %1434 = vadd.xlane.f32.xlu0 %v1433
        %v1435 = vpop.xlane.xlu0 %1434
        %v1436 = vsel %vm827, %v1432, 0.0
        %1437 = vadd.xlane.f32.xlu0 %v1436
        %v1438 = vpop.xlane.xlu0 %1437
        %v1439 = vrcp.pop %v1435
        %v1440 = vrcp.pop %v1438
        %v1441 = vmul.f32 %v1430, %v1439
        %v1442 = vmul.f32 %v1432, %v1440
        %v1443 = vpack.c.bf16 %v1441, %v1441
        %v1444 = vpack.c.bf16 %v1442, %v1442
        %1445 = vrot.lane.b32.xlu0 %v1321, 64
        %v1446 = vpop.permute.xlu0 %1445
        %v1448 = vsel %vm827, %v1443, 0
        %v1451 = vsel %vm857, %v1446, 0
        %1453 = vmatprep.subr.bf16.mxu0 0
        %1454 = vmatpush1.bf16.msra.mxu0 %v1451
        %1455 = vmatprep.subr.bf16.mxu0 0
        %1456 = vmatpush1.bf16.msra.mxu0 0
        %1457 = vmatprep.subr.bf16.mxu0 0
        %1458 = vmatpush1.bf16.msra.mxu0 0
        %1459 = vmatprep.subr.bf16.mxu0 0
        %1460 = vmatpush1.bf16.msra.mxu0 0
        %1461 = vmatprep.subr.bf16.mxu0 0
        %1462 = vmatpush1.bf16.msra.mxu0 0
        %1463 = vmatprep.subr.bf16.mxu0 0
        %1464 = vmatpush1.bf16.msra.mxu0 0
        %1465 = vmatprep.subr.bf16.mxu0 0
        %1466 = vmatpush1.bf16.msra.mxu0 0
        %1467 = vmatprep.subr.bf16.mxu0 0
        %1468 = vmatpush1.bf16.msra.mxu0 0
        %1469 = vmatprep.subr.bf16.mxu0 0
        %1470 = vmatpush1.bf16.msra.mxu0 0
        %1471 = vmatprep.subr.bf16.mxu0 0
        %1472 = vmatpush1.bf16.msra.mxu0 0
        %1473 = vmatprep.subr.bf16.mxu0 0
        %1474 = vmatpush1.bf16.msra.mxu0 0
        %1475 = vmatprep.subr.bf16.mxu0 0
        %1476 = vmatpush1.bf16.msra.mxu0 0
        %1477 = vmatprep.subr.bf16.mxu0 0
        %1478 = vmatpush1.bf16.msra.mxu0 0
        %1479 = vmatprep.subr.bf16.mxu0 0
        %1480 = vmatpush1.bf16.msra.mxu0 0
        %1481 = vmatprep.subr.bf16.mxu0 0
        %1482 = vmatpush1.bf16.msra.mxu0 0
        %1483 = vmatprep.subr.bf16.mxu0 0
        %1484 = vmatpush1.bf16.msra.mxu0 0
        %1485 = vmatprep.mubr.bf16.mxu0 0
        %1486 = vmatmul.mubr.bf16.gmra.mrb[0].mxu0 %v1448
        %v1487 = vpop.f32.mrb[0].mxu0
        %v1488 = vadd.f32 0.0, %v1487
        %v1489 = vpop.f32.mrb[0].mxu0
        %v1490 = vpop.f32.mrb[0].mxu0
        %v1491 = vpop.f32.mrb[0].mxu0
        %1492 = vdwg.mxu0
        %1493 = vrot.lane.b32.xlu0 %v1322, 64
        %v1494 = vpop.permute.xlu0 %1493
        %v1496 = vsel %vm827, %v1444, 0
        %v1499 = vsel %vm857, %v1494, 0
        %1501 = vmatprep.subr.bf16.mxu0 0
        %1502 = vmatpush1.bf16.msra.mxu0 %v1499
        %1503 = vmatprep.subr.bf16.mxu0 0
        %1504 = vmatpush1.bf16.msra.mxu0 0
        %1505 = vmatprep.subr.bf16.mxu0 0
        %1506 = vmatpush1.bf16.msra.mxu0 0
        %1507 = vmatprep.subr.bf16.mxu0 0
        %1508 = vmatpush1.bf16.msra.mxu0 0
        %1509 = vmatprep.subr.bf16.mxu0 0
        %1510 = vmatpush1.bf16.msra.mxu0 0
        %1511 = vmatprep.subr.bf16.mxu0 0
        %1512 = vmatpush1.bf16.msra.mxu0 0
        %1513 = vmatprep.subr.bf16.mxu0 0
        %1514 = vmatpush1.bf16.msra.mxu0 0
        %1515 = vmatprep.subr.bf16.mxu0 0
        %1516 = vmatpush1.bf16.msra.mxu0 0
        %1517 = vmatprep.subr.bf16.mxu0 0
        %1518 = vmatpush1.bf16.msra.mxu0 0
        %1519 = vmatprep.subr.bf16.mxu0 0
        %1520 = vmatpush1.bf16.msra.mxu0 0
        %1521 = vmatprep.subr.bf16.mxu0 0
        %1522 = vmatpush1.bf16.msra.mxu0 0
        %1523 = vmatprep.subr.bf16.mxu0 0
        %1524 = vmatpush1.bf16.msra.mxu0 0
        %1525 = vmatprep.subr.bf16.mxu0 0
        %1526 = vmatpush1.bf16.msra.mxu0 0
        %1527 = vmatprep.subr.bf16.mxu0 0
        %1528 = vmatpush1.bf16.msra.mxu0 0
        %1529 = vmatprep.subr.bf16.mxu0 0
        %1530 = vmatpush1.bf16.msra.mxu0 0
        %1531 = vmatprep.subr.bf16.mxu0 0
        %1532 = vmatpush1.bf16.msra.mxu0 0
        %1533 = vmatprep.mubr.bf16.mxu0 0
        %1534 = vmatmul.mubr.bf16.gmra.mrb[0].mxu0 %v1496
        %v1535 = vpop.f32.mrb[0].mxu0
        %v1536 = vadd.f32 0.0, %v1535
        %v1537 = vpop.f32.mrb[0].mxu0
        %v1538 = vpop.f32.mrb[0].mxu0
        %v1539 = vpop.f32.mrb[0].mxu0
        %1540 = vdwg.mxu0
        %1542 = vrot.lane.b32.xlu0 %v1536, 16
        %v1543 = vpop.permute.xlu0 %1542
        %v1545 = vsel %vm731, %v1488, %v1543
        %v1546 = vpack.c.bf16 %v1545, %v1545
        %s1547 = scalar_lea.vmem %s8, 16
        %v1548 = vld [vmem:[%s1547] sm:$0xf]
        %v1549 = vld [vmem:[%s1547 + $0x4] sm:$0xf]
        %v1550 = vld [vmem:[%s1547 + $0x8] sm:$0xf]
        %v1551 = vld [vmem:[%s1547 + $0xc] sm:$0xf]
        %s1552 = scalar_lea.vmem %s9, 1
        %v1553 = vld [vmem:[%s1552] sm:$0x1]
        %v1555 = vlaneseq
        %v1556 = vshrl.u32 %v1555, 7
        %v1557 = vsub.s32 0, %v1556
        %v1558 = vrot.slane %v1553, %v1557
        %v1564 = vunpack.c.l.b16 %v1548
        %v1565 = vunpack.c.l.b16 %v1549
        %v1566 = vunpack.c.l.b16 %v1550
        %v1567 = vunpack.c.l.b16 %v1551
        %v1568 = vpack.c.b16 %v1565, %v1564
        %v1569 = vpack.c.b16 %v1567, %v1566
        %v1573 = vsel %vm610, %v1546, 0
        %1575 = vmatprep.subr.bf16.mxu0 0
        %1576 = vmatpush1.bf16.msra.mxu0 %v1568
        %1577 = vmatprep.subr.bf16.mxu0 0
        %1578 = vmatpush1.bf16.msra.mxu0 %v1569
        %1579 = vmatprep.subr.bf16.mxu0 0
        %1580 = vmatpush1.bf16.msra.mxu0 0
        %1581 = vmatprep.subr.bf16.mxu0 0
        %1582 = vmatpush1.bf16.msra.mxu0 0
        %1583 = vmatprep.subr.bf16.mxu0 0
        %1584 = vmatpush1.bf16.msra.mxu0 0
        %1585 = vmatprep.subr.bf16.mxu0 0
        %1586 = vmatpush1.bf16.msra.mxu0 0
        %1587 = vmatprep.subr.bf16.mxu0 0
        %1588 = vmatpush1.bf16.msra.mxu0 0
        %1589 = vmatprep.subr.bf16.mxu0 0
        %1590 = vmatpush1.bf16.msra.mxu0 0
        %1591 = vmatprep.subr.bf16.mxu0 0
        %1592 = vmatpush1.bf16.msra.mxu0 0
        %1593 = vmatprep.subr.bf16.mxu0 0
        %1594 = vmatpush1.bf16.msra.mxu0 0
        %1595 = vmatprep.subr.bf16.mxu0 0
        %1596 = vmatpush1.bf16.msra.mxu0 0
        %1597 = vmatprep.subr.bf16.mxu0 0
        %1598 = vmatpush1.bf16.msra.mxu0 0
        %1599 = vmatprep.subr.bf16.mxu0 0
        %1600 = vmatpush1.bf16.msra.mxu0 0
        %1601 = vmatprep.subr.bf16.mxu0 0
        %1602 = vmatpush1.bf16.msra.mxu0 0
        %1603 = vmatprep.subr.bf16.mxu0 0
        %1604 = vmatpush1.bf16.msra.mxu0 0
        %1605 = vmatprep.subr.bf16.mxu0 0
        %1606 = vmatpush1.bf16.msra.mxu0 0
        %1607 = vmatprep.mubr.bf16.mxu0 0
        %1608 = vmatmul.mubr.bf16.gmra.mrb[0].mxu0 %v1573
        %v1609 = vpop.f32.mrb[0].mxu0
        %v1610 = vadd.f32 %v1558, %v1609
        %v1611 = vpop.f32.mrb[0].mxu0
        %v1612 = vpop.f32.mrb[0].mxu0
        %v1613 = vpop.f32.mrb[0].mxu0
        %1614 = vdwg.mxu0
        %v1615 = vadd.f32 %v1240, %v1610
        %s1616 = scalar_lea.vmem %s10, 1
        %v1617 = vld [vmem:[%s1616] sm:$0x1]
        %s1618 = scalar_lea.vmem %s11, 1
        %v1619 = vld [vmem:[%s1618] sm:$0x1]
        %v1620 = vsel %vm610, %v1615, 0.0
        %1621 = vadd.xlane.f32.xlu0 %v1620
        %v1622 = vpop.xlane.xlu0 %1621
        %v1623 = vmul.f32 %v1622, %v614
        %v1624 = vsub.f32 %v1615, %v1623
        %v1625 = vmul.f32 %v1624, %v1624
        %v1626 = vsel %vm610, %v1625, 0.0
        %1627 = vadd.xlane.f32.xlu0 %v1626
        %v1628 = vpop.xlane.xlu0 %1627
        %v1629 = vmul.f32 %v1628, %v614
        %v1630 = vadd.f32 %v1629, 1e-12
        %v1631 = vrsqrt.pop %v1630
        %v1632 = vmul.f32 %v1624, %v1631
        %v1634 = vlaneseq
        %v1635 = vshrl.u32 %v1634, 7
        %v1636 = vsub.s32 0, %v1635
        %v1637 = vrot.slane %v1617, %v1636
        %v1639 = vmul.f32 %v1632, %v1637
        %v1641 = vlaneseq
        %v1642 = vshrl.u32 %v1641, 7
        %v1643 = vsub.s32 0, %v1642
        %v1644 = vrot.slane %v1619, %v1643
        %v1646 = vadd.f32 %v1639, %v1644
        %v1647 = vpack.c.bf16 %v1646, %v1646
        %s1648 = scalar_lea.vmem %s12, 16
        %v1649 = vld [vmem:[%s1648] sm:$0xf]
        %v1650 = vld [vmem:[%s1648 + $0x4] sm:$0xf]
        %v1651 = vld [vmem:[%s1648 + $0x8] sm:$0xf]
        %v1652 = vld [vmem:[%s1648 + $0xc] sm:$0xf]
        %s1653 = scalar_lea.vmem %s13, 1
        %v1654 = vld [vmem:[%s1653] sm:$0x1]
        %v1656 = vlaneseq
        %v1657 = vshrl.u32 %v1656, 7
        %v1658 = vsub.s32 0, %v1657
        %v1659 = vrot.slane %v1654, %v1658
        %v1665 = vunpack.c.l.b16 %v1649
        %v1666 = vunpack.c.l.b16 %v1650
        %v1667 = vunpack.c.l.b16 %v1651
        %v1668 = vunpack.c.l.b16 %v1652
        %v1669 = vpack.c.b16 %v1666, %v1665
        %v1670 = vpack.c.b16 %v1668, %v1667
        %v1674 = vsel %vm610, %v1647, 0
        %1676 = vmatprep.subr.bf16.mxu0 0
        %1677 = vmatpush1.bf16.msra.mxu0 %v1669
        %1678 = vmatprep.subr.bf16.mxu0 0
        %1679 = vmatpush1.bf16.msra.mxu0 %v1670
        %1680 = vmatprep.subr.bf16.mxu0 0
        %1681 = vmatpush1.bf16.msra.mxu0 0
        %1682 = vmatprep.subr.bf16.mxu0 0
        %1683 = vmatpush1.bf16.msra.mxu0 0
        %1684 = vmatprep.subr.bf16.mxu0 0
        %1685 = vmatpush1.bf16.msra.mxu0 0
        %1686 = vmatprep.subr.bf16.mxu0 0
        %1687 = vmatpush1.bf16.msra.mxu0 0
        %1688 = vmatprep.subr.bf16.mxu0 0
        %1689 = vmatpush1.bf16.msra.mxu0 0
        %1690 = vmatprep.subr.bf16.mxu0 0
        %1691 = vmatpush1.bf16.msra.mxu0 0
        %1692 = vmatprep.subr.bf16.mxu0 0
        %1693 = vmatpush1.bf16.msra.mxu0 0
        %1694 = vmatprep.subr.bf16.mxu0 0
        %1695 = vmatpush1.bf16.msra.mxu0 0
        %1696 = vmatprep.subr.bf16.mxu0 0
        %1697 = vmatpush1.bf16.msra.mxu0 0
        %1698 = vmatprep.subr.bf16.mxu0 0
        %1699 = vmatpush1.bf16.msra.mxu0 0
        %1700 = vmatprep.subr.bf16.mxu0 0
        %1701 = vmatpush1.bf16.msra.mxu0 0
        %1702 = vmatprep.subr.bf16.mxu0 0
        %1703 = vmatpush1.bf16.msra.mxu0 0
        %1704 = vmatprep.subr.bf16.mxu0 0
        %1705 = vmatpush1.bf16.msra.mxu0 0
        %1706 = vmatprep.subr.bf16.mxu0 0
        %1707 = vmatpush1.bf16.msra.mxu0 0
        %1708 = vmatprep.mubr.bf16.mxu0 0
        %1709 = vmatmul.mubr.bf16.gmra.mrb[0].mxu0 %v1674
        %v1710 = vpop.f32.mrb[0].mxu0
        %v1711 = vadd.f32 %v1659, %v1710
        %v1712 = vpop.f32.mrb[0].mxu0
        %v1713 = vpop.f32.mrb[0].mxu0
        %v1714 = vpop.f32.mrb[0].mxu0
        %1715 = vdwg.mxu0
        %v1716 = vmul.f32 %v1711, %v1711
        %v1717 = vmul.f32 %v1711, %v1716
        %v1718 = vmul.f32 %v1717, 0.044715
        %v1719 = vadd.f32 %v1711, %v1718
        %v1720 = vmul.f32 %v1719, 0.7978846
        %v1721 = vtanh.pop %v1720
        %v1722 = vadd.f32 %v1721, 1.0
        %v1723 = vmul.f32 %v1722, 0.5
        %v1724 = vmul.f32 %v1711, %v1723
        %v1725 = vpack.c.bf16 %v1724, %v1724
        %s1726 = scalar_lea.vmem %s14, 32
        %v1727 = vld [vmem:[%s1726] sm:$0xf]
        %v1728 = vld [vmem:[%s1726 + $0x4] sm:$0xf]
        %v1729 = vld [vmem:[%s1726 + $0x8] sm:$0xf]
        %v1730 = vld [vmem:[%s1726 + $0xc] sm:$0xf]
        %v1731 = vld [vmem:[%s1726 + $0x10] sm:$0xf]
        %v1732 = vld [vmem:[%s1726 + $0x14] sm:$0xf]
        %v1733 = vld [vmem:[%s1726 + $0x18] sm:$0xf]
        %v1734 = vld [vmem:[%s1726 + $0x1c] sm:$0xf]
        %s1735 = scalar_lea.vmem %s15, 1
        %v1736 = vld [vmem:[%s1735] sm:$0x1]
        %v1738 = vlaneseq
        %v1739 = vshrl.u32 %v1738, 7
        %v1740 = vsub.s32 0, %v1739
        %v1741 = vrot.slane %v1736, %v1740
        %v1751 = vunpack.c.l.b16 %v1727
        %v1752 = vunpack.c.l.b16 %v1728
        %v1753 = vunpack.c.l.b16 %v1729
        %v1754 = vunpack.c.l.b16 %v1730
        %v1755 = vunpack.c.l.b16 %v1731
        %v1756 = vunpack.c.l.b16 %v1732
        %v1757 = vunpack.c.l.b16 %v1733
        %v1758 = vunpack.c.l.b16 %v1734
        %v1759 = vpack.c.b16 %v1752, %v1751
        %v1760 = vpack.c.b16 %v1754, %v1753
        %v1761 = vpack.c.b16 %v1756, %v1755
        %v1762 = vpack.c.b16 %v1758, %v1757
        %v1768 = vsel %vm1167, %v1725, 0
        %1770 = vmatprep.subr.bf16.mxu0 0
        %1771 = vmatpush1.bf16.msra.mxu0 %v1759
        %1772 = vmatprep.subr.bf16.mxu0 0
        %1773 = vmatpush1.bf16.msra.mxu0 %v1760
        %1774 = vmatprep.subr.bf16.mxu0 0
        %1775 = vmatpush1.bf16.msra.mxu0 %v1761
        %1776 = vmatprep.subr.bf16.mxu0 0
        %1777 = vmatpush1.bf16.msra.mxu0 %v1762
        %1778 = vmatprep.subr.bf16.mxu0 0
        %1779 = vmatpush1.bf16.msra.mxu0 0
        %1780 = vmatprep.subr.bf16.mxu0 0
        %1781 = vmatpush1.bf16.msra.mxu0 0
        %1782 = vmatprep.subr.bf16.mxu0 0
        %1783 = vmatpush1.bf16.msra.mxu0 0
        %1784 = vmatprep.subr.bf16.mxu0 0
        %1785 = vmatpush1.bf16.msra.mxu0 0
        %1786 = vmatprep.subr.bf16.mxu0 0
        %1787 = vmatpush1.bf16.msra.mxu0 0
        %1788 = vmatprep.subr.bf16.mxu0 0
        %1789 = vmatpush1.bf16.msra.mxu0 0
        %1790 = vmatprep.subr.bf16.mxu0 0
        %1791 = vmatpush1.bf16.msra.mxu0 0
        %1792 = vmatprep.subr.bf16.mxu0 0
        %1793 = vmatpush1.bf16.msra.mxu0 0
        %1794 = vmatprep.subr.bf16.mxu0 0
        %1795 = vmatpush1.bf16.msra.mxu0 0
        %1796 = vmatprep.subr.bf16.mxu0 0
        %1797 = vmatpush1.bf16.msra.mxu0 0
        %1798 = vmatprep.subr.bf16.mxu0 0
        %1799 = vmatpush1.bf16.msra.mxu0 0
        %1800 = vmatprep.subr.bf16.mxu0 0
        %1801 = vmatpush1.bf16.msra.mxu0 0
        %1802 = vmatprep.mubr.bf16.mxu0 0
        %1803 = vmatmul.mubr.bf16.gmra.mrb[0].mxu0 %v1768
        %v1804 = vpop.f32.mrb[0].mxu0
        %v1805 = vadd.f32 %v1741, %v1804
        %v1806 = vpop.f32.mrb[0].mxu0
        %v1807 = vpop.f32.mrb[0].mxu0
        %v1808 = vpop.f32.mrb[0].mxu0
        %1809 = vdwg.mxu0
        %v1810 = vadd.f32 %v1646, %v1805
        %s1811 = scalar_lea.vmem %s16, 1
        %v1812 = vld [vmem:[%s1811] sm:$0x1]
        %s1813 = scalar_lea.vmem %s17, 1
        %v1814 = vld [vmem:[%s1813] sm:$0x1]
        %v1815 = vsel %vm610, %v1810, 0.0
        %1816 = vadd.xlane.f32.xlu0 %v1815
        %v1817 = vpop.xlane.xlu0 %1816
        %v1818 = vmul.f32 %v1817, %v614
        %v1819 = vsub.f32 %v1810, %v1818
        %v1820 = vmul.f32 %v1819, %v1819
        %v1821 = vsel %vm610, %v1820, 0.0
        %1822 = vadd.xlane.f32.xlu0 %v1821
        %v1823 = vpop.xlane.xlu0 %1822
        %v1824 = vmul.f32 %v1823, %v614
        %v1825 = vadd.f32 %v1824, 1e-12
        %v1826 = vrsqrt.pop %v1825
        %v1827 = vmul.f32 %v1819, %v1826
        %v1829 = vlaneseq
        %v1830 = vshrl.u32 %v1829, 7
        %v1831 = vsub.s32 0, %v1830
        %v1832 = vrot.slane %v1812, %v1831
        %v1834 = vmul.f32 %v1827, %v1832
        %v1836 = vlaneseq
        %v1837 = vshrl.u32 %v1836, 7
        %v1838 = vsub.s32 0, %v1837
        %v1839 = vrot.slane %v1814, %v1838
        %v1841 = vadd.f32 %v1834, %v1839
        %1842 = vst.msk [vmem:[%s590] sm:$0xff] %vm610, %v1841
        %s1843 = sand.u32 %s433, 1
        %s1844 = scalar_lea.sflag [#allocation3], %s1843
        %s1845 = sand.u32 %s433, 1
        %s1846 = smul.addr %s1845, 8
        %s1847 = scalar_lea.vmem [#allocation2], %s1846
        // Predicated region
        $region93: #{language_embedding_layer.1} parent=91 // pred_check
          %p1848 = pneg %p443
        $region94: #{language_embedding_layer.1} parent=91 // pred_check_branch
          %1850 = sbr.rel (%p1848) target = $region96
        $region95: #{language_embedding_layer.1} parent=91 // pred_region
          %s1852 = ssub.s32 128, 128
          %1853 = vsyncadd %s1844, %s1852
          %s1854 = smul.addr %s32, 128
          %s1855 = scalar_lea.hbm %s18, %s1854
          %s1857 = sshll.u32 %s1847, 4
          %s1858 = int_to_ptr.vmem [resolvable:$true] %s1857
          %1860 = dma.vmem_to_hbm [thread:$0]  %s1858, 128, %s1855, %s1844
        $region96: #{language_embedding_layer.1} parent=91 // pred_fallthru
          _
      $region92: #{language_embedding_layer.1} parent=5 // pred_fallthru
        _
      %p1861 = scmp.le.s32.totalorder 2, %s27
      // Predicated region
      $region97: #{language_embedding_layer.1} parent=5 // pred_check
        %p1862 = pneg %p1861
      $region98: #{language_embedding_layer.1} parent=5 // pred_check_branch
        %1864 = sbr.rel (%p1862) target = $region100
      $region99: #{language_embedding_layer.1} parent=5 // pred_region
        %s1865 = ssub.s32 %s27, 2
        // Predicated region
        $region101: #{language_embedding_layer.1} parent=99 // pred_check
          %p1866 = pneg %p449
        $region102: #{language_embedding_layer.1} parent=99 // pred_check_branch
          %1868 = sbr.rel (%p1866) target = $region104
        $region103: #{language_embedding_layer.1} parent=99 // pred_region
          %s1869 = sand.u32 %s434, 1
          %s1870 = scalar_lea.sflag [#allocation3], %s1869
          %s1871 = sand.u32 %s434, 1
          %s1872 = smul.addr %s1871, 8
          %s1873 = scalar_lea.vmem [#allocation2], %s1872
          %1874 = dma.done %s1870, 128
        $region104: #{language_embedding_layer.1} parent=99 // pred_fallthru
          _
      $region100: #{language_embedding_layer.1} parent=5 // pred_fallthru
        _
    $region6: #{language_embedding_layer.1} parent=1 // loop_footer
      %s31 = sadd.s32 1, %s27
    $region7: #{language_embedding_layer.1} parent=1 // loop_footer_branch
      %26 = sbr.rel target = $region3
    $region8: #{language_embedding_layer.1} parent=1 // loop_exit
      _
    %1875 = vsyncpa [#allocation3], 1
    %s1876 = scalar_lea.sflag [#allocation3], 1
    %1877 = vsyncpa %s1876, 1

</llo_original>
